<compile_context>
chip_gen: v7x
topology: tpu7x:2x2x1
jax: 0.10.0
libtpu: 0.0.40
codegen_flags: <defaults>
</compile_context>

<pallas_src>
import functools

import jax
import jax.numpy as jnp
from jax import lax
from jax.experimental import pallas as pl
from jax.experimental.pallas import tpu as pltpu


def _repmixer_block_kernel(x_ref, wmix_ref, wffn_ref, cp_ref, b1_ref,
                           w1_ref, w2_ref, o_ref, *, K, P, N, Hc, mm_dtype,
                           exact_gelu):
    """One (Bt*N, C) row-slab per grid step.

    x_ref   : (R, C)    input rows, R = Bt * N   (row r = b*N + n)
    wmix_ref: (K, C)    mixer depthwise weights (conv-branch BN scale folded)
    wffn_ref: (K, C)    ConvFFN depthwise weights (BN scale folded)
    cp_ref  : (8, C)    stacked per-channel params (rows documented below)
    b1_ref  : (1, H)    fc1 bias
    w1_ref  : (C, H)    fc1 weight (torch (H,C,1,1) transposed), mm_dtype
    w2_ref  : (H, C)    fc2 weight (torch (C,H,1,1) transposed), mm_dtype
    o_ref   : (R, C)    output rows
    """
    x = x_ref[...].astype(jnp.float32)              # (R, C)
    R = x.shape[0]
    H = w1_ref.shape[1]

    mix_pw = cp_ref[0, :]   # identity-BN scale + (1x1 dw conv * scale-BN scale)
    mix_b  = cp_ref[1, :]   # summed mixer branch biases
    sn     = cp_ref[2, :]   # "norm" branch BN scale
    bn     = cp_ref[3, :]   # "norm" branch BN bias
    ls_mix = cp_ref[4, :]   # RepMixer layer_scale
    bf     = cp_ref[5, :]   # ConvFFN depthwise-conv BN bias
    b2     = cp_ref[6, :]   # fc2 bias
    ls_blk = cp_ref[7, :]   # block layer_scale
    b1     = b1_ref[0, :]   # fc1 bias (H,)

    # Sequence position of every row (row r = b*N + n -> n), computed ONCE on a
    # lane-narrow (R, 1) iota.  Per-tap validity masks (suppressing zero-pad
    # edges and cross-batch wrap-around) are also computed once and shared by
    # BOTH depthwise convolutions below.
    nidx = lax.rem(lax.broadcasted_iota(jnp.int32, (R, 1), 0), jnp.int32(N))
    masks = {}
    for k in range(K):
        if k == P:
            continue
        if k < P:
            masks[k] = (nidx >= (P - k)).astype(jnp.float32)   # src n+d >= 0
        else:
            masks[k] = (nidx < (N + P - k)).astype(jnp.float32)  # src n+d < N

    def dwconv(z, w_ref):
        # Depthwise (1, K) conv along the sequence axis, zero padding P = K//2.
        # shifted_k[r] = z[r + (k - P)] if still inside the same batch element,
        # else 0.  Shifts are XLU rolls on registers; the hoisted (R, 1) mask
        # kills invalid rows.
        acc = z * w_ref[P, :]                       # centre tap: no shift/mask
        for k in range(K):
            if k == P:
                continue
            d = k - P
            rolled = pltpu.roll(z, shift=(-d) % R, axis=0)
            acc = acc + rolled * (masks[k] * w_ref[k, :])
        return acc

    # ---------- RepMixer: x + ls * (mixer(x) - norm(x)) ----------
    diff = x * mix_pw + mix_b + dwconv(x, wmix_ref) - (x * sn + bn)
    y1 = x + ls_mix * diff

    # ---------- ConvFFN: dw-conv+BN -> fc1 -> GELU -> fc2 ----------
    # Tiled over H-chunks: fc1 slice -> GELU -> fc2 partial accumulate, so the
    # full (R, H) f32 intermediate is never materialized (VMEM on v7x).
    # NOTE: the bf16 cast of the activations t / h before the MXU is the
    # dominant accuracy knob (weights are also bf16 by default).
    t = dwconv(y1, wffn_ref) + bf                                     # (R, C)
    t_mm = t.astype(mm_dtype)
    f = None
    for c in range(H // Hc):
        lo, hi = c * Hc, (c + 1) * Hc
        h = jnp.dot(t_mm, w1_ref[:, lo:hi],
                    preferred_element_type=jnp.float32) + b1[lo:hi]   # (R, Hc)
        if exact_gelu:
            # Exact nn.GELU (erf): VPU polynomial, bit-matches PyTorch.
            h = 0.5 * h * (1.0 + lax.erf(h * 0.7071067811865476))
        else:
            # tanh approximation: runs on the EUP (recommended fast path).
            h = 0.5 * h * (1.0 + jnp.tanh(
                0.7978845608028654 * (h + 0.044715 * h * h * h)))
        part = jnp.dot(h.astype(mm_dtype), w2_ref[lo:hi, :],
                       preferred_element_type=jnp.float32)            # (R, C)
        f = part if f is None else f + part
    f = f + b2

    o_ref[...] = (y1 + ls_blk * f).astype(o_ref.dtype)


def _vmem_capacity_bytes():
    """Physical VMEM of the attached TPU; conservative fallback (v7x 64 MiB)."""
    try:
        return int(pltpu.get_tpu_info().vmem_capacity_bytes)
    except Exception:
        return 64 * 1024 * 1024


def _choose_hc(H, max_hc=512):
    """H-chunk for the in-kernel ConvFFN loop.  Small H: single chunk.  Large
    H: largest divisor of H that is a multiple of 128 (lane-aligned ref
    slices) and <= max_hc; falls back to H if no aligned divisor exists."""
    if H <= max_hc:
        return H
    best = None
    for hc in range(128, max_hc + 1, 128):
        if H % hc == 0:
            best = hc
    return best if best is not None else H


def _choose_bt(B, N, C, H, K, Hc, mm_bytes, budget_bytes, target_rows=512):
    """Pick a batch tile Bt (divisor of B).

    Accounts for ALL VMEM consumers: double-buffered input+output activation
    blocks, single-buffered weights, and in-kernel f32 temporaries (including
    the (R, Hc) GELU chunk).  Guarantees >= 2 grid steps when B > 1 so both
    v7x TensorCores get work, and prefers R = Bt*N a multiple of 256 (MXU
    tile) with >= target_rows rows."""
    def est(bt):
        R = bt * N
        act_io = 2 * 2 * R * C * 4                                  # in + out, x2 bufs
        weights = ((2 * K + 8) * C + H) * 4 + 2 * C * H * mm_bytes  # Buffered(1)
        live = 6 * R * C * 4 + R * C * mm_bytes + 2 * R * Hc * 4    # kernel temps
        return act_io + weights + live

    def legal(bt):
        return B % bt == 0 and ((bt * N) % 8 == 0 or bt == B)

    cands = [bt for bt in range(1, B + 1) if legal(bt) and est(bt) <= budget_bytes]
    if not cands:
        # Fall back to the smallest sublane-legal tile (never the whole batch).
        for bt in range(1, B + 1):
            if legal(bt):
                return bt
        return 1

    if B > 1:                                   # keep >= 2 grid steps (v7x 2 TCs)
        halved = [bt for bt in cands if bt <= B // 2]
        if halved:
            cands = halved

    def pick(cs):
        big = [bt for bt in cs if bt * N >= target_rows]
        return min(big, key=lambda bt: bt * N) if big else max(cs, key=lambda bt: bt * N)

    aligned = [bt for bt in cands if (bt * N) % 256 == 0]
    return pick(aligned) if aligned else pick(cands)


def repmixer_block(x, params, *, matmul_dtype=jnp.bfloat16, exact_gelu=False):
    """x: (B, N, C) float32 -> (B, N, C).

    exact_gelu=False (default) uses the tanh GELU approximation (EUP path,
    recommended); exact_gelu=True bit-matches PyTorch nn.GELU (erf, VPU)."""
    B, N, C = x.shape
    wmix, wffn, cp, b1, w1, w2 = (params[k] for k in
                                  ("wmix", "wffn", "cp", "b1", "w1", "w2"))
    K = wmix.shape[0]
    assert K % 2 == 1, "kernel_size must be odd (padding = K // 2)"
    P = K // 2
    H = w1.shape[1]

    # MXU inputs in matmul_dtype (bf16 on all current gens), f32 accumulation.
    w1 = w1.astype(matmul_dtype)
    w2 = w2.astype(matmul_dtype)
    mm_bytes = jnp.dtype(matmul_dtype).itemsize

    capacity = _vmem_capacity_bytes()
    budget = int(0.60 * capacity)                        # tile-chooser budget
    vmem_limit = min(int(0.85 * capacity), 100 * 1024 * 1024)

    Hc = _choose_hc(H)
    Bt = _choose_bt(B, N, C, H, K, Hc, mm_bytes, budget)
    R = Bt * N
    x2d = x.reshape(B * N, C)

    flops = 4 * B * N * C * H + 6 * K * B * N * C + 24 * B * N * C
    bytes_accessed = (2 * B * N * C * 4
                      + ((2 * K + 8) * C + H) * 4
                      + 2 * C * H * mm_bytes)
    cost = pl.CostEstimate(flops=flops, transcendentals=B * N * H,
                           bytes_accessed=bytes_accessed)

    kernel = functools.partial(_repmixer_block_kernel, K=K, P=P, N=N, Hc=Hc,
                               mm_dtype=matmul_dtype, exact_gelu=exact_gelu)
    const = pl.Buffered(1)     # grid-invariant operands: single-buffer them
    out2d = pl.pallas_call(
        kernel,
        out_shape=jax.ShapeDtypeStruct((B * N, C), x.dtype),
        grid_spec=pltpu.PrefetchScalarGridSpec(
            num_scalar_prefetch=0,
            grid=(B // Bt,),
            in_specs=[
                pl.BlockSpec((R, C), lambda i: (i, 0)),
                pl.BlockSpec((K, C), lambda i: (0, 0), pipeline_mode=const),
                pl.BlockSpec((K, C), lambda i: (0, 0), pipeline_mode=const),
                pl.BlockSpec((8, C), lambda i: (0, 0), pipeline_mode=const),
                pl.BlockSpec((1, H), lambda i: (0, 0), pipeline_mode=const),
                pl.BlockSpec((C, H), lambda i: (0, 0), pipeline_mode=const),
                pl.BlockSpec((H, C), lambda i: (0, 0), pipeline_mode=const),
            ],
            out_specs=pl.BlockSpec((R, C), lambda i: (i, 0)),
        ),
        compiler_params=pltpu.CompilerParams(
            dimension_semantics=("parallel",),
            vmem_limit_bytes=vmem_limit),
        cost_estimate=cost,
    )(x2d, wmix, wffn, cp, b1, w1, w2)
    return out2d.reshape(B, N, C)


def init_params(key, dim, kernel_size=11, mlp_ratio=4.0,
                layer_scale_init=1e-5, bn_eps=1e-5):
    """Deterministic synthetic parameters matching the module's shapes."""
    K = kernel_size
    H = int(dim * mlp_ratio)
    keys = iter(jax.random.split(key, 32))

    def bn_fold(n):
        gamma = 1.0 + 0.1 * jax.random.normal(next(keys), (n,), jnp.float32)
        beta = 0.1 * jax.random.normal(next(keys), (n,), jnp.float32)
        mean = 0.1 * jax.random.normal(next(keys), (n,), jnp.float32)
        var = jax.random.uniform(next(keys), (n,), jnp.float32, 0.5, 1.5)
        s = gamma * lax.rsqrt(var + bn_eps)
        return s, beta - mean * s

    # RepMixer "norm": MobileOneBlock reduced to its identity BatchNorm.
    sn, bn = bn_fold(dim)
    # RepMixer "mixer": identity-BN + (1x1 dw conv + BN) + ((1,K) dw conv + BN).
    s_id, b_id = bn_fold(dim)
    s_sc, b_sc = bn_fold(dim)
    s_cv, b_cv = bn_fold(dim)
    w1_mix = 0.02 * jax.random.normal(next(keys), (dim,), jnp.float32)
    wK_mix = 0.02 * jax.random.normal(next(keys), (dim, K), jnp.float32)
    # ConvFFN: depthwise (1,K) conv (no bias) + BN, fc1 (1x1), fc2 (1x1).
    s_f, b_f = bn_fold(dim)
    wK_ffn = 0.02 * jax.random.normal(next(keys), (dim, K), jnp.float32)
    w1 = 0.02 * jax.random.normal(next(keys), (dim, H), jnp.float32)
    b1 = jnp.zeros((1, H), jnp.float32)            # module init: conv bias = 0
    w2 = 0.02 * jax.random.normal(next(keys), (H, dim), jnp.float32)
    b2 = jnp.zeros((dim,), jnp.float32)
    ls_mix = layer_scale_init * jnp.ones((dim,), jnp.float32)
    ls_blk = layer_scale_init * jnp.ones((dim,), jnp.float32)

    mix_pw = s_id + w1_mix * s_sc
    mix_b = b_id + b_sc + b_cv
    wmix = (wK_mix * s_cv[:, None]).T              # (K, dim), conv-BN folded
    wffn = (wK_ffn * s_f[:, None]).T               # (K, dim), BN scale folded
    cp = jnp.stack([mix_pw, mix_b, sn, bn, ls_mix, b_f, b2, ls_blk], axis=0)
    return {"wmix": wmix, "wffn": wffn, "cp": cp, "b1": b1, "w1": w1, "w2": w2}


def reference_forward(x, params, *, exact_gelu=True):
    """Pure-JAX reference with identical math, used only as a sanity check."""
    B, N, C = x.shape
    wmix, wffn, cp = params["wmix"], params["wffn"], params["cp"]
    K = wmix.shape[0]
    P = K // 2
    mix_pw, mix_b, sn, bn, ls_mix, bf, b2, ls_blk = (cp[i] for i in range(8))

    def dwconv(z, w):
        zp = jnp.pad(z, ((0, 0), (P, P), (0, 0)))
        return sum(zp[:, k:k + N, :] * w[k] for k in range(K))

    diff = x * mix_pw + mix_b + dwconv(x, wmix) - (x * sn + bn)
    y1 = x + ls_mix * diff
    t = dwconv(y1, wffn) + bf
    h = t @ params["w1"] + params["b1"][0]
    if exact_gelu:
        h = 0.5 * h * (1.0 + lax.erf(h * 0.7071067811865476))
    else:
        h = 0.5 * h * (1.0 + jnp.tanh(0.7978845608028654
                                      * (h + 0.044715 * h * h * h)))
    f = h @ params["w2"] + b2
    return y1 + ls_blk * f


if __name__ == "__main__":
    B, N, C, K = 2, 16, 64, 11          # batch, seq_len, dim, kernel_size
    key = jax.random.PRNGKey(0)
    kx, kp = jax.random.split(key)
    x = jax.random.normal(kx, (B, N, C), jnp.float32)
    # layer_scale_init_value is a constructor arg; use 0.1 so the mixer / FFN
    # paths contribute visibly in the numeric check.
    params = init_params(kp, dim=C, kernel_size=K, mlp_ratio=4.0,
                         layer_scale_init=0.1)

    # f32-MXU + exact erf GELU: tight check against the PyTorch-matching ref.
    ref_exact = reference_forward(x, params, exact_gelu=True)
    out_f32 = repmixer_block(x, params, matmul_dtype=jnp.float32,
                             exact_gelu=True)
    jax.block_until_ready(out_f32)
    assert out_f32.shape == (B, N, C)
    err32 = float(jnp.max(jnp.abs(out_f32 - ref_exact)))
    assert jnp.allclose(out_f32, ref_exact, atol=1e-3, rtol=1e-3), \
        f"f32/exact max abs err = {err32}"

    # Default fast path: bf16 MXU + tanh GELU (EUP).  Looser tolerance covers
    # the bf16 activation/weight casts (the dominant error source).
    ref_tanh = reference_forward(x, params, exact_gelu=False)
    out_fast = repmixer_block(x, params)
    jax.block_until_ready(out_fast)
    err16 = float(jnp.max(jnp.abs(out_fast - ref_tanh)))
    assert jnp.allclose(out_fast, ref_tanh, atol=2e-2, rtol=2e-2), \
        f"bf16/tanh max abs err = {err16}"

    print("KERNEL_OK")
</pallas_src>

<mosaic_0001>
module attributes {stable_mosaic.version = 11 : i64} {
  func.func @_repmixer_block_kernel(%arg0: i32, %arg1: memref<16x64xf32, #tpu.memory_space<vmem>>, %arg2: memref<11x64xf32, #tpu.memory_space<vmem>>, %arg3: memref<11x64xf32, #tpu.memory_space<vmem>>, %arg4: memref<8x64xf32, #tpu.memory_space<vmem>>, %arg5: memref<1x256xf32, #tpu.memory_space<vmem>>, %arg6: memref<64x256xf32, #tpu.memory_space<vmem>>, %arg7: memref<256x64xf32, #tpu.memory_space<vmem>>, %arg8: memref<16x64xf32, #tpu.memory_space<vmem>>) attributes {dimension_semantics = [#tpu.dimension_semantics<parallel>], iteration_bounds = array<i64: 2>, scalar_prefetch = 0 : i64, scratch_operands = 0 : i64, tpu.core_type = #tpu.core_type<tc>, window_params = [{transform_indices = @transform_0, window_bounds = array<i64: 16, 64>}, {pipeline_mode = #tpu.pipeline_mode<synchronous>, transform_indices = @transform_1, window_bounds = array<i64: 11, 64>}, {pipeline_mode = #tpu.pipeline_mode<synchronous>, transform_indices = @transform_2, window_bounds = array<i64: 11, 64>}, {pipeline_mode = #tpu.pipeline_mode<synchronous>, transform_indices = @transform_3, window_bounds = array<i64: 8, 64>}, {pipeline_mode = #tpu.pipeline_mode<synchronous>, transform_indices = @transform_4, window_bounds = array<i64: 1, 256>}, {pipeline_mode = #tpu.pipeline_mode<synchronous>, transform_indices = @transform_5, window_bounds = array<i64: 64, 256>}, {pipeline_mode = #tpu.pipeline_mode<synchronous>, transform_indices = @transform_6, window_bounds = array<i64: 256, 64>}, {transform_indices = @transform_7, window_bounds = array<i64: 16, 64>}]} {
    %c0 = arith.constant 0 : index
    %c0_0 = arith.constant 0 : index
    %0 = vector.load %arg1[%c0, %c0_0] : memref<16x64xf32, #tpu.memory_space<vmem>>, vector<16x64xf32>
    %c0_1 = arith.constant 0 : index
    %c0_2 = arith.constant 0 : index
    %1 = vector.load %arg4[%c0_1, %c0_2] : memref<8x64xf32, #tpu.memory_space<vmem>>, vector<1x64xf32>
    %2 = vector.shape_cast %1 : vector<1x64xf32> to vector<64xf32>
    %c1 = arith.constant 1 : index
    %c0_3 = arith.constant 0 : index
    %3 = vector.load %arg4[%c1, %c0_3] : memref<8x64xf32, #tpu.memory_space<vmem>>, vector<1x64xf32>
    %4 = vector.shape_cast %3 : vector<1x64xf32> to vector<64xf32>
    %c2 = arith.constant 2 : index
    %c0_4 = arith.constant 0 : index
    %5 = vector.load %arg4[%c2, %c0_4] : memref<8x64xf32, #tpu.memory_space<vmem>>, vector<1x64xf32>
    %6 = vector.shape_cast %5 : vector<1x64xf32> to vector<64xf32>
    %c3 = arith.constant 3 : index
    %c0_5 = arith.constant 0 : index
    %7 = vector.load %arg4[%c3, %c0_5] : memref<8x64xf32, #tpu.memory_space<vmem>>, vector<1x64xf32>
    %8 = vector.shape_cast %7 : vector<1x64xf32> to vector<64xf32>
    %c4 = arith.constant 4 : index
    %c0_6 = arith.constant 0 : index
    %9 = vector.load %arg4[%c4, %c0_6] : memref<8x64xf32, #tpu.memory_space<vmem>>, vector<1x64xf32>
    %10 = vector.shape_cast %9 : vector<1x64xf32> to vector<64xf32>
    %c5 = arith.constant 5 : index
    %c0_7 = arith.constant 0 : index
    %11 = vector.load %arg4[%c5, %c0_7] : memref<8x64xf32, #tpu.memory_space<vmem>>, vector<1x64xf32>
    %12 = vector.shape_cast %11 : vector<1x64xf32> to vector<64xf32>
    %c6 = arith.constant 6 : index
    %c0_8 = arith.constant 0 : index
    %13 = vector.load %arg4[%c6, %c0_8] : memref<8x64xf32, #tpu.memory_space<vmem>>, vector<1x64xf32>
    %14 = vector.shape_cast %13 : vector<1x64xf32> to vector<64xf32>
    %c7 = arith.constant 7 : index
    %c0_9 = arith.constant 0 : index
    %15 = vector.load %arg4[%c7, %c0_9] : memref<8x64xf32, #tpu.memory_space<vmem>>, vector<1x64xf32>
    %16 = vector.shape_cast %15 : vector<1x64xf32> to vector<64xf32>
    %c0_10 = arith.constant 0 : index
    %c0_11 = arith.constant 0 : index
    %17 = vector.load %arg5[%c0_10, %c0_11] : memref<1x256xf32, #tpu.memory_space<vmem>>, vector<1x256xf32>
    %18 = vector.shape_cast %17 : vector<1x256xf32> to vector<256xf32>
    %19 = tpu.iota {dimensions = array<i32: 0>} : vector<16x1xi32>
    %c16_i32 = arith.constant 16 : i32
    %20 = vector.broadcast %c16_i32 : i32 to vector<16x1xi32>
    %21 = arith.remsi %19, %20 : vector<16x1xi32>
    %c5_i32 = arith.constant 5 : i32
    %22 = vector.broadcast %c5_i32 : i32 to vector<16x1xi32>
    %23 = arith.cmpi sge, %21, %22 : vector<16x1xi32>
    %24 = arith.extui %23 : vector<16x1xi1> to vector<16x1xi32>
    %25 = arith.sitofp %24 : vector<16x1xi32> to vector<16x1xf32>
    %c4_i32 = arith.constant 4 : i32
    %26 = vector.broadcast %c4_i32 : i32 to vector<16x1xi32>
    %27 = arith.cmpi sge, %21, %26 : vector<16x1xi32>
    %28 = arith.extui %27 : vector<16x1xi1> to vector<16x1xi32>
    %29 = arith.sitofp %28 : vector<16x1xi32> to vector<16x1xf32>
    %c3_i32 = arith.constant 3 : i32
    %30 = vector.broadcast %c3_i32 : i32 to vector<16x1xi32>
    %31 = arith.cmpi sge, %21, %30 : vector<16x1xi32>
    %32 = arith.extui %31 : vector<16x1xi1> to vector<16x1xi32>
    %33 = arith.sitofp %32 : vector<16x1xi32> to vector<16x1xf32>
    %c2_i32 = arith.constant 2 : i32
    %34 = vector.broadcast %c2_i32 : i32 to vector<16x1xi32>
    %35 = arith.cmpi sge, %21, %34 : vector<16x1xi32>
    %36 = arith.extui %35 : vector<16x1xi1> to vector<16x1xi32>
    %37 = arith.sitofp %36 : vector<16x1xi32> to vector<16x1xf32>
    %c1_i32 = arith.constant 1 : i32
    %38 = vector.broadcast %c1_i32 : i32 to vector<16x1xi32>
    %39 = arith.cmpi sge, %21, %38 : vector<16x1xi32>
    %40 = arith.extui %39 : vector<16x1xi1> to vector<16x1xi32>
    %41 = arith.sitofp %40 : vector<16x1xi32> to vector<16x1xf32>
    %c15_i32 = arith.constant 15 : i32
    %42 = vector.broadcast %c15_i32 : i32 to vector<16x1xi32>
    %43 = arith.cmpi slt, %21, %42 : vector<16x1xi32>
    %44 = arith.extui %43 : vector<16x1xi1> to vector<16x1xi32>
    %45 = arith.sitofp %44 : vector<16x1xi32> to vector<16x1xf32>
    %c14_i32 = arith.constant 14 : i32
    %46 = vector.broadcast %c14_i32 : i32 to vector<16x1xi32>
    %47 = arith.cmpi slt, %21, %46 : vector<16x1xi32>
    %48 = arith.extui %47 : vector<16x1xi1> to vector<16x1xi32>
    %49 = arith.sitofp %48 : vector<16x1xi32> to vector<16x1xf32>
    %c13_i32 = arith.constant 13 : i32
    %50 = vector.broadcast %c13_i32 : i32 to vector<16x1xi32>
    %51 = arith.cmpi slt, %21, %50 : vector<16x1xi32>
    %52 = arith.extui %51 : vector<16x1xi1> to vector<16x1xi32>
    %53 = arith.sitofp %52 : vector<16x1xi32> to vector<16x1xf32>
    %c12_i32 = arith.constant 12 : i32
    %54 = vector.broadcast %c12_i32 : i32 to vector<16x1xi32>
    %55 = arith.cmpi slt, %21, %54 : vector<16x1xi32>
    %56 = arith.extui %55 : vector<16x1xi1> to vector<16x1xi32>
    %57 = arith.sitofp %56 : vector<16x1xi32> to vector<16x1xf32>
    %c11_i32 = arith.constant 11 : i32
    %58 = vector.broadcast %c11_i32 : i32 to vector<16x1xi32>
    %59 = arith.cmpi slt, %21, %58 : vector<16x1xi32>
    %60 = arith.extui %59 : vector<16x1xi1> to vector<16x1xi32>
    %61 = arith.sitofp %60 : vector<16x1xi32> to vector<16x1xf32>
    %62 = vector.shape_cast %2 : vector<64xf32> to vector<1x64xf32>
    %63 = vector.broadcast %62 : vector<1x64xf32> to vector<16x64xf32>
    %64 = arith.mulf %0, %63 : vector<16x64xf32>
    %65 = vector.shape_cast %4 : vector<64xf32> to vector<1x64xf32>
    %66 = vector.broadcast %65 : vector<1x64xf32> to vector<16x64xf32>
    %67 = arith.addf %64, %66 : vector<16x64xf32>
    %c5_12 = arith.constant 5 : index
    %c0_13 = arith.constant 0 : index
    %68 = vector.load %arg2[%c5_12, %c0_13] : memref<11x64xf32, #tpu.memory_space<vmem>>, vector<1x64xf32>
    %69 = vector.shape_cast %68 : vector<1x64xf32> to vector<64xf32>
    %70 = vector.shape_cast %69 : vector<64xf32> to vector<1x64xf32>
    %71 = vector.broadcast %70 : vector<1x64xf32> to vector<16x64xf32>
    %72 = arith.mulf %0, %71 : vector<16x64xf32>
    %c5_i32_14 = arith.constant 5 : i32
    %73 = tpu.dynamic_rotate %0 by %c5_i32_14 dim 0 : vector<16x64xf32>, i32 -> vector<16x64xf32>
    %c0_15 = arith.constant 0 : index
    %c0_16 = arith.constant 0 : index
    %74 = vector.load %arg2[%c0_15, %c0_16] : memref<11x64xf32, #tpu.memory_space<vmem>>, vector<1x64xf32>
    %75 = vector.shape_cast %74 : vector<1x64xf32> to vector<64xf32>
    %76 = vector.shape_cast %75 : vector<64xf32> to vector<1x64xf32>
    %77 = vector.broadcast %25 : vector<16x1xf32> to vector<16x64xf32>
    %78 = vector.broadcast %76 : vector<1x64xf32> to vector<16x64xf32>
    %79 = arith.mulf %77, %78 : vector<16x64xf32>
    %80 = arith.mulf %73, %79 : vector<16x64xf32>
    %81 = arith.addf %72, %80 : vector<16x64xf32>
    %c4_i32_17 = arith.constant 4 : i32
    %82 = tpu.dynamic_rotate %0 by %c4_i32_17 dim 0 : vector<16x64xf32>, i32 -> vector<16x64xf32>
    %c1_18 = arith.constant 1 : index
    %c0_19 = arith.constant 0 : index
    %83 = vector.load %arg2[%c1_18, %c0_19] : memref<11x64xf32, #tpu.memory_space<vmem>>, vector<1x64xf32>
    %84 = vector.shape_cast %83 : vector<1x64xf32> to vector<64xf32>
    %85 = vector.shape_cast %84 : vector<64xf32> to vector<1x64xf32>
    %86 = vector.broadcast %29 : vector<16x1xf32> to vector<16x64xf32>
    %87 = vector.broadcast %85 : vector<1x64xf32> to vector<16x64xf32>
    %88 = arith.mulf %86, %87 : vector<16x64xf32>
    %89 = arith.mulf %82, %88 : vector<16x64xf32>
    %90 = arith.addf %81, %89 : vector<16x64xf32>
    %c3_i32_20 = arith.constant 3 : i32
    %91 = tpu.dynamic_rotate %0 by %c3_i32_20 dim 0 : vector<16x64xf32>, i32 -> vector<16x64xf32>
    %c2_21 = arith.constant 2 : index
    %c0_22 = arith.constant 0 : index
    %92 = vector.load %arg2[%c2_21, %c0_22] : memref<11x64xf32, #tpu.memory_space<vmem>>, vector<1x64xf32>
    %93 = vector.shape_cast %92 : vector<1x64xf32> to vector<64xf32>
    %94 = vector.shape_cast %93 : vector<64xf32> to vector<1x64xf32>
    %95 = vector.broadcast %33 : vector<16x1xf32> to vector<16x64xf32>
    %96 = vector.broadcast %94 : vector<1x64xf32> to vector<16x64xf32>
    %97 = arith.mulf %95, %96 : vector<16x64xf32>
    %98 = arith.mulf %91, %97 : vector<16x64xf32>
    %99 = arith.addf %90, %98 : vector<16x64xf32>
    %c2_i32_23 = arith.constant 2 : i32
    %100 = tpu.dynamic_rotate %0 by %c2_i32_23 dim 0 : vector<16x64xf32>, i32 -> vector<16x64xf32>
    %c3_24 = arith.constant 3 : index
    %c0_25 = arith.constant 0 : index
    %101 = vector.load %arg2[%c3_24, %c0_25] : memref<11x64xf32, #tpu.memory_space<vmem>>, vector<1x64xf32>
    %102 = vector.shape_cast %101 : vector<1x64xf32> to vector<64xf32>
    %103 = vector.shape_cast %102 : vector<64xf32> to vector<1x64xf32>
    %104 = vector.broadcast %37 : vector<16x1xf32> to vector<16x64xf32>
    %105 = vector.broadcast %103 : vector<1x64xf32> to vector<16x64xf32>
    %106 = arith.mulf %104, %105 : vector<16x64xf32>
    %107 = arith.mulf %100, %106 : vector<16x64xf32>
    %108 = arith.addf %99, %107 : vector<16x64xf32>
    %c1_i32_26 = arith.constant 1 : i32
    %109 = tpu.dynamic_rotate %0 by %c1_i32_26 dim 0 : vector<16x64xf32>, i32 -> vector<16x64xf32>
    %c4_27 = arith.constant 4 : index
    %c0_28 = arith.constant 0 : index
    %110 = vector.load %arg2[%c4_27, %c0_28] : memref<11x64xf32, #tpu.memory_space<vmem>>, vector<1x64xf32>
    %111 = vector.shape_cast %110 : vector<1x64xf32> to vector<64xf32>
    %112 = vector.shape_cast %111 : vector<64xf32> to vector<1x64xf32>
    %113 = vector.broadcast %41 : vector<16x1xf32> to vector<16x64xf32>
    %114 = vector.broadcast %112 : vector<1x64xf32> to vector<16x64xf32>
    %115 = arith.mulf %113, %114 : vector<16x64xf32>
    %116 = arith.mulf %109, %115 : vector<16x64xf32>
    %117 = arith.addf %108, %116 : vector<16x64xf32>
    %c15_i32_29 = arith.constant 15 : i32
    %118 = tpu.dynamic_rotate %0 by %c15_i32_29 dim 0 : vector<16x64xf32>, i32 -> vector<16x64xf32>
    %c6_30 = arith.constant 6 : index
    %c0_31 = arith.constant 0 : index
    %119 = vector.load %arg2[%c6_30, %c0_31] : memref<11x64xf32, #tpu.memory_space<vmem>>, vector<1x64xf32>
    %120 = vector.shape_cast %119 : vector<1x64xf32> to vector<64xf32>
    %121 = vector.shape_cast %120 : vector<64xf32> to vector<1x64xf32>
    %122 = vector.broadcast %45 : vector<16x1xf32> to vector<16x64xf32>
    %123 = vector.broadcast %121 : vector<1x64xf32> to vector<16x64xf32>
    %124 = arith.mulf %122, %123 : vector<16x64xf32>
    %125 = arith.mulf %118, %124 : vector<16x64xf32>
    %126 = arith.addf %117, %125 : vector<16x64xf32>
    %c14_i32_32 = arith.constant 14 : i32
    %127 = tpu.dynamic_rotate %0 by %c14_i32_32 dim 0 : vector<16x64xf32>, i32 -> vector<16x64xf32>
    %c7_33 = arith.constant 7 : index
    %c0_34 = arith.constant 0 : index
    %128 = vector.load %arg2[%c7_33, %c0_34] : memref<11x64xf32, #tpu.memory_space<vmem>>, vector<1x64xf32>
    %129 = vector.shape_cast %128 : vector<1x64xf32> to vector<64xf32>
    %130 = vector.shape_cast %129 : vector<64xf32> to vector<1x64xf32>
    %131 = vector.broadcast %49 : vector<16x1xf32> to vector<16x64xf32>
    %132 = vector.broadcast %130 : vector<1x64xf32> to vector<16x64xf32>
    %133 = arith.mulf %131, %132 : vector<16x64xf32>
    %134 = arith.mulf %127, %133 : vector<16x64xf32>
    %135 = arith.addf %126, %134 : vector<16x64xf32>
    %c13_i32_35 = arith.constant 13 : i32
    %136 = tpu.dynamic_rotate %0 by %c13_i32_35 dim 0 : vector<16x64xf32>, i32 -> vector<16x64xf32>
    %c8 = arith.constant 8 : index
    %c0_36 = arith.constant 0 : index
    %137 = vector.load %arg2[%c8, %c0_36] : memref<11x64xf32, #tpu.memory_space<vmem>>, vector<1x64xf32>
    %138 = vector.shape_cast %137 : vector<1x64xf32> to vector<64xf32>
    %139 = vector.shape_cast %138 : vector<64xf32> to vector<1x64xf32>
    %140 = vector.broadcast %53 : vector<16x1xf32> to vector<16x64xf32>
    %141 = vector.broadcast %139 : vector<1x64xf32> to vector<16x64xf32>
    %142 = arith.mulf %140, %141 : vector<16x64xf32>
    %143 = arith.mulf %136, %142 : vector<16x64xf32>
    %144 = arith.addf %135, %143 : vector<16x64xf32>
    %c12_i32_37 = arith.constant 12 : i32
    %145 = tpu.dynamic_rotate %0 by %c12_i32_37 dim 0 : vector<16x64xf32>, i32 -> vector<16x64xf32>
    %c9 = arith.constant 9 : index
    %c0_38 = arith.constant 0 : index
    %146 = vector.load %arg2[%c9, %c0_38] : memref<11x64xf32, #tpu.memory_space<vmem>>, vector<1x64xf32>
    %147 = vector.shape_cast %146 : vector<1x64xf32> to vector<64xf32>
    %148 = vector.shape_cast %147 : vector<64xf32> to vector<1x64xf32>
    %149 = vector.broadcast %57 : vector<16x1xf32> to vector<16x64xf32>
    %150 = vector.broadcast %148 : vector<1x64xf32> to vector<16x64xf32>
    %151 = arith.mulf %149, %150 : vector<16x64xf32>
    %152 = arith.mulf %145, %151 : vector<16x64xf32>
    %153 = arith.addf %144, %152 : vector<16x64xf32>
    %c11_i32_39 = arith.constant 11 : i32
    %154 = tpu.dynamic_rotate %0 by %c11_i32_39 dim 0 : vector<16x64xf32>, i32 -> vector<16x64xf32>
    %c10 = arith.constant 10 : index
    %c0_40 = arith.constant 0 : index
    %155 = vector.load %arg2[%c10, %c0_40] : memref<11x64xf32, #tpu.memory_space<vmem>>, vector<1x64xf32>
    %156 = vector.shape_cast %155 : vector<1x64xf32> to vector<64xf32>
    %157 = vector.shape_cast %156 : vector<64xf32> to vector<1x64xf32>
    %158 = vector.broadcast %61 : vector<16x1xf32> to vector<16x64xf32>
    %159 = vector.broadcast %157 : vector<1x64xf32> to vector<16x64xf32>
    %160 = arith.mulf %158, %159 : vector<16x64xf32>
    %161 = arith.mulf %154, %160 : vector<16x64xf32>
    %162 = arith.addf %153, %161 : vector<16x64xf32>
    %163 = arith.addf %67, %162 : vector<16x64xf32>
    %164 = vector.shape_cast %6 : vector<64xf32> to vector<1x64xf32>
    %165 = vector.broadcast %164 : vector<1x64xf32> to vector<16x64xf32>
    %166 = arith.mulf %0, %165 : vector<16x64xf32>
    %167 = vector.shape_cast %8 : vector<64xf32> to vector<1x64xf32>
    %168 = vector.broadcast %167 : vector<1x64xf32> to vector<16x64xf32>
    %169 = arith.addf %166, %168 : vector<16x64xf32>
    %170 = arith.subf %163, %169 : vector<16x64xf32>
    %171 = vector.shape_cast %10 : vector<64xf32> to vector<1x64xf32>
    %172 = vector.broadcast %171 : vector<1x64xf32> to vector<16x64xf32>
    %173 = arith.mulf %172, %170 : vector<16x64xf32>
    %174 = arith.addf %0, %173 : vector<16x64xf32>
    %c5_41 = arith.constant 5 : index
    %c0_42 = arith.constant 0 : index
    %175 = vector.load %arg3[%c5_41, %c0_42] : memref<11x64xf32, #tpu.memory_space<vmem>>, vector<1x64xf32>
    %176 = vector.shape_cast %175 : vector<1x64xf32> to vector<64xf32>
    %177 = vector.shape_cast %176 : vector<64xf32> to vector<1x64xf32>
    %178 = vector.broadcast %177 : vector<1x64xf32> to vector<16x64xf32>
    %179 = arith.mulf %174, %178 : vector<16x64xf32>
    %c5_i32_43 = arith.constant 5 : i32
    %180 = tpu.dynamic_rotate %174 by %c5_i32_43 dim 0 : vector<16x64xf32>, i32 -> vector<16x64xf32>
    %c0_44 = arith.constant 0 : index
    %c0_45 = arith.constant 0 : index
    %181 = vector.load %arg3[%c0_44, %c0_45] : memref<11x64xf32, #tpu.memory_space<vmem>>, vector<1x64xf32>
    %182 = vector.shape_cast %181 : vector<1x64xf32> to vector<64xf32>
    %183 = vector.shape_cast %182 : vector<64xf32> to vector<1x64xf32>
    %184 = vector.broadcast %25 : vector<16x1xf32> to vector<16x64xf32>
    %185 = vector.broadcast %183 : vector<1x64xf32> to vector<16x64xf32>
    %186 = arith.mulf %184, %185 : vector<16x64xf32>
    %187 = arith.mulf %180, %186 : vector<16x64xf32>
    %188 = arith.addf %179, %187 : vector<16x64xf32>
    %c4_i32_46 = arith.constant 4 : i32
    %189 = tpu.dynamic_rotate %174 by %c4_i32_46 dim 0 : vector<16x64xf32>, i32 -> vector<16x64xf32>
    %c1_47 = arith.constant 1 : index
    %c0_48 = arith.constant 0 : index
    %190 = vector.load %arg3[%c1_47, %c0_48] : memref<11x64xf32, #tpu.memory_space<vmem>>, vector<1x64xf32>
    %191 = vector.shape_cast %190 : vector<1x64xf32> to vector<64xf32>
    %192 = vector.shape_cast %191 : vector<64xf32> to vector<1x64xf32>
    %193 = vector.broadcast %29 : vector<16x1xf32> to vector<16x64xf32>
    %194 = vector.broadcast %192 : vector<1x64xf32> to vector<16x64xf32>
    %195 = arith.mulf %193, %194 : vector<16x64xf32>
    %196 = arith.mulf %189, %195 : vector<16x64xf32>
    %197 = arith.addf %188, %196 : vector<16x64xf32>
    %c3_i32_49 = arith.constant 3 : i32
    %198 = tpu.dynamic_rotate %174 by %c3_i32_49 dim 0 : vector<16x64xf32>, i32 -> vector<16x64xf32>
    %c2_50 = arith.constant 2 : index
    %c0_51 = arith.constant 0 : index
    %199 = vector.load %arg3[%c2_50, %c0_51] : memref<11x64xf32, #tpu.memory_space<vmem>>, vector<1x64xf32>
    %200 = vector.shape_cast %199 : vector<1x64xf32> to vector<64xf32>
    %201 = vector.shape_cast %200 : vector<64xf32> to vector<1x64xf32>
    %202 = vector.broadcast %33 : vector<16x1xf32> to vector<16x64xf32>
    %203 = vector.broadcast %201 : vector<1x64xf32> to vector<16x64xf32>
    %204 = arith.mulf %202, %203 : vector<16x64xf32>
    %205 = arith.mulf %198, %204 : vector<16x64xf32>
    %206 = arith.addf %197, %205 : vector<16x64xf32>
    %c2_i32_52 = arith.constant 2 : i32
    %207 = tpu.dynamic_rotate %174 by %c2_i32_52 dim 0 : vector<16x64xf32>, i32 -> vector<16x64xf32>
    %c3_53 = arith.constant 3 : index
    %c0_54 = arith.constant 0 : index
    %208 = vector.load %arg3[%c3_53, %c0_54] : memref<11x64xf32, #tpu.memory_space<vmem>>, vector<1x64xf32>
    %209 = vector.shape_cast %208 : vector<1x64xf32> to vector<64xf32>
    %210 = vector.shape_cast %209 : vector<64xf32> to vector<1x64xf32>
    %211 = vector.broadcast %37 : vector<16x1xf32> to vector<16x64xf32>
    %212 = vector.broadcast %210 : vector<1x64xf32> to vector<16x64xf32>
    %213 = arith.mulf %211, %212 : vector<16x64xf32>
    %214 = arith.mulf %207, %213 : vector<16x64xf32>
    %215 = arith.addf %206, %214 : vector<16x64xf32>
    %c1_i32_55 = arith.constant 1 : i32
    %216 = tpu.dynamic_rotate %174 by %c1_i32_55 dim 0 : vector<16x64xf32>, i32 -> vector<16x64xf32>
    %c4_56 = arith.constant 4 : index
    %c0_57 = arith.constant 0 : index
    %217 = vector.load %arg3[%c4_56, %c0_57] : memref<11x64xf32, #tpu.memory_space<vmem>>, vector<1x64xf32>
    %218 = vector.shape_cast %217 : vector<1x64xf32> to vector<64xf32>
    %219 = vector.shape_cast %218 : vector<64xf32> to vector<1x64xf32>
    %220 = vector.broadcast %41 : vector<16x1xf32> to vector<16x64xf32>
    %221 = vector.broadcast %219 : vector<1x64xf32> to vector<16x64xf32>
    %222 = arith.mulf %220, %221 : vector<16x64xf32>
    %223 = arith.mulf %216, %222 : vector<16x64xf32>
    %224 = arith.addf %215, %223 : vector<16x64xf32>
    %c15_i32_58 = arith.constant 15 : i32
    %225 = tpu.dynamic_rotate %174 by %c15_i32_58 dim 0 : vector<16x64xf32>, i32 -> vector<16x64xf32>
    %c6_59 = arith.constant 6 : index
    %c0_60 = arith.constant 0 : index
    %226 = vector.load %arg3[%c6_59, %c0_60] : memref<11x64xf32, #tpu.memory_space<vmem>>, vector<1x64xf32>
    %227 = vector.shape_cast %226 : vector<1x64xf32> to vector<64xf32>
    %228 = vector.shape_cast %227 : vector<64xf32> to vector<1x64xf32>
    %229 = vector.broadcast %45 : vector<16x1xf32> to vector<16x64xf32>
    %230 = vector.broadcast %228 : vector<1x64xf32> to vector<16x64xf32>
    %231 = arith.mulf %229, %230 : vector<16x64xf32>
    %232 = arith.mulf %225, %231 : vector<16x64xf32>
    %233 = arith.addf %224, %232 : vector<16x64xf32>
    %c14_i32_61 = arith.constant 14 : i32
    %234 = tpu.dynamic_rotate %174 by %c14_i32_61 dim 0 : vector<16x64xf32>, i32 -> vector<16x64xf32>
    %c7_62 = arith.constant 7 : index
    %c0_63 = arith.constant 0 : index
    %235 = vector.load %arg3[%c7_62, %c0_63] : memref<11x64xf32, #tpu.memory_space<vmem>>, vector<1x64xf32>
    %236 = vector.shape_cast %235 : vector<1x64xf32> to vector<64xf32>
    %237 = vector.shape_cast %236 : vector<64xf32> to vector<1x64xf32>
    %238 = vector.broadcast %49 : vector<16x1xf32> to vector<16x64xf32>
    %239 = vector.broadcast %237 : vector<1x64xf32> to vector<16x64xf32>
    %240 = arith.mulf %238, %239 : vector<16x64xf32>
    %241 = arith.mulf %234, %240 : vector<16x64xf32>
    %242 = arith.addf %233, %241 : vector<16x64xf32>
    %c13_i32_64 = arith.constant 13 : i32
    %243 = tpu.dynamic_rotate %174 by %c13_i32_64 dim 0 : vector<16x64xf32>, i32 -> vector<16x64xf32>
    %c8_65 = arith.constant 8 : index
    %c0_66 = arith.constant 0 : index
    %244 = vector.load %arg3[%c8_65, %c0_66] : memref<11x64xf32, #tpu.memory_space<vmem>>, vector<1x64xf32>
    %245 = vector.shape_cast %244 : vector<1x64xf32> to vector<64xf32>
    %246 = vector.shape_cast %245 : vector<64xf32> to vector<1x64xf32>
    %247 = vector.broadcast %53 : vector<16x1xf32> to vector<16x64xf32>
    %248 = vector.broadcast %246 : vector<1x64xf32> to vector<16x64xf32>
    %249 = arith.mulf %247, %248 : vector<16x64xf32>
    %250 = arith.mulf %243, %249 : vector<16x64xf32>
    %251 = arith.addf %242, %250 : vector<16x64xf32>
    %c12_i32_67 = arith.constant 12 : i32
    %252 = tpu.dynamic_rotate %174 by %c12_i32_67 dim 0 : vector<16x64xf32>, i32 -> vector<16x64xf32>
    %c9_68 = arith.constant 9 : index
    %c0_69 = arith.constant 0 : index
    %253 = vector.load %arg3[%c9_68, %c0_69] : memref<11x64xf32, #tpu.memory_space<vmem>>, vector<1x64xf32>
    %254 = vector.shape_cast %253 : vector<1x64xf32> to vector<64xf32>
    %255 = vector.shape_cast %254 : vector<64xf32> to vector<1x64xf32>
    %256 = vector.broadcast %57 : vector<16x1xf32> to vector<16x64xf32>
    %257 = vector.broadcast %255 : vector<1x64xf32> to vector<16x64xf32>
    %258 = arith.mulf %256, %257 : vector<16x64xf32>
    %259 = arith.mulf %252, %258 : vector<16x64xf32>
    %260 = arith.addf %251, %259 : vector<16x64xf32>
    %c11_i32_70 = arith.constant 11 : i32
    %261 = tpu.dynamic_rotate %174 by %c11_i32_70 dim 0 : vector<16x64xf32>, i32 -> vector<16x64xf32>
    %c10_71 = arith.constant 10 : index
    %c0_72 = arith.constant 0 : index
    %262 = vector.load %arg3[%c10_71, %c0_72] : memref<11x64xf32, #tpu.memory_space<vmem>>, vector<1x64xf32>
    %263 = vector.shape_cast %262 : vector<1x64xf32> to vector<64xf32>
    %264 = vector.shape_cast %263 : vector<64xf32> to vector<1x64xf32>
    %265 = vector.broadcast %61 : vector<16x1xf32> to vector<16x64xf32>
    %266 = vector.broadcast %264 : vector<1x64xf32> to vector<16x64xf32>
    %267 = arith.mulf %265, %266 : vector<16x64xf32>
    %268 = arith.mulf %261, %267 : vector<16x64xf32>
    %269 = arith.addf %260, %268 : vector<16x64xf32>
    %270 = vector.shape_cast %12 : vector<64xf32> to vector<1x64xf32>
    %271 = vector.broadcast %270 : vector<1x64xf32> to vector<16x64xf32>
    %272 = arith.addf %269, %271 : vector<16x64xf32>
    %c0_73 = arith.constant 0 : index
    %c0_74 = arith.constant 0 : index
    %273 = vector.load %arg6[%c0_73, %c0_74] : memref<64x256xf32, #tpu.memory_space<vmem>>, vector<64x256xf32>
    %cst = arith.constant dense<0.000000e+00> : vector<16x256xf32>
    %274 = tpu.matmul %272, %273, %cst {dimension_numbers = #tpu.dot_dimension_numbers<[1], [0], [0], [1], [0, 0, 1, 1], [], []>} : vector<16x64xf32>, vector<64x256xf32>, vector<16x256xf32> -> vector<16x256xf32>
    %275 = vector.shape_cast %18 : vector<256xf32> to vector<1x256xf32>
    %276 = vector.broadcast %275 : vector<1x256xf32> to vector<16x256xf32>
    %277 = arith.addf %274, %276 : vector<16x256xf32>
    %cst_75 = arith.constant 5.000000e-01 : f32
    %278 = vector.broadcast %cst_75 : f32 to vector<16x256xf32>
    %279 = arith.mulf %278, %277 : vector<16x256xf32>
    %cst_76 = arith.constant 0.707106769 : f32
    %280 = vector.broadcast %cst_76 : f32 to vector<16x256xf32>
    %281 = arith.mulf %277, %280 : vector<16x256xf32>
    %282 = math.erf %281 : vector<16x256xf32>
    %cst_77 = arith.constant 1.000000e+00 : f32
    %283 = vector.broadcast %cst_77 : f32 to vector<16x256xf32>
    %284 = arith.addf %283, %282 : vector<16x256xf32>
    %285 = arith.mulf %279, %284 : vector<16x256xf32>
    %c0_78 = arith.constant 0 : index
    %c0_79 = arith.constant 0 : index
    %286 = vector.load %arg7[%c0_78, %c0_79] : memref<256x64xf32, #tpu.memory_space<vmem>>, vector<256x64xf32>
    %cst_80 = arith.constant dense<0.000000e+00> : vector<16x64xf32>
    %287 = tpu.matmul %285, %286, %cst_80 {dimension_numbers = #tpu.dot_dimension_numbers<[1], [0], [0], [1], [0, 0, 1, 1], [], []>} : vector<16x256xf32>, vector<256x64xf32>, vector<16x64xf32> -> vector<16x64xf32>
    %288 = vector.shape_cast %14 : vector<64xf32> to vector<1x64xf32>
    %289 = vector.broadcast %288 : vector<1x64xf32> to vector<16x64xf32>
    %290 = arith.addf %287, %289 : vector<16x64xf32>
    %291 = vector.shape_cast %16 : vector<64xf32> to vector<1x64xf32>
    %292 = vector.broadcast %291 : vector<1x64xf32> to vector<16x64xf32>
    %293 = arith.mulf %292, %290 : vector<16x64xf32>
    %294 = arith.addf %174, %293 : vector<16x64xf32>
    %c0_81 = arith.constant 0 : index
    %c0_82 = arith.constant 0 : index
    %295 = vector.load %arg8[%c0_81, %c0_82] : memref<16x64xf32, #tpu.memory_space<vmem>>, vector<16x64xf32>
    tpu.vector_store %arg8[%c0_81, %c0_82], %294 {strides = array<i32>} : memref<16x64xf32, #tpu.memory_space<vmem>>, vector<16x64xf32>,
    return
  }
  func.func @transform_0(%arg0: i32) -> (i32, i32) {
    %c0_i32 = arith.constant 0 : i32
    %c0_i32_0 = arith.constant 0 : i32
    return %arg0, %c0_i32 : i32, i32
  }
  func.func @transform_1(%arg0: i32) -> (i32, i32) {
    %c0_i32 = arith.constant 0 : i32
    %c0_i32_0 = arith.constant 0 : i32
    %c0_i32_1 = arith.constant 0 : i32
    return %c0_i32, %c0_i32_0 : i32, i32
  }
  func.func @transform_2(%arg0: i32) -> (i32, i32) {
    %c0_i32 = arith.constant 0 : i32
    %c0_i32_0 = arith.constant 0 : i32
    %c0_i32_1 = arith.constant 0 : i32
    return %c0_i32, %c0_i32_0 : i32, i32
  }
  func.func @transform_3(%arg0: i32) -> (i32, i32) {
    %c0_i32 = arith.constant 0 : i32
    %c0_i32_0 = arith.constant 0 : i32
    %c0_i32_1 = arith.constant 0 : i32
    return %c0_i32, %c0_i32_0 : i32, i32
  }
  func.func @transform_4(%arg0: i32) -> (i32, i32) {
    %c0_i32 = arith.constant 0 : i32
    %c0_i32_0 = arith.constant 0 : i32
    %c0_i32_1 = arith.constant 0 : i32
    return %c0_i32, %c0_i32_0 : i32, i32
  }
  func.func @transform_5(%arg0: i32) -> (i32, i32) {
    %c0_i32 = arith.constant 0 : i32
    %c0_i32_0 = arith.constant 0 : i32
    %c0_i32_1 = arith.constant 0 : i32
    return %c0_i32, %c0_i32_0 : i32, i32
  }
  func.func @transform_6(%arg0: i32) -> (i32, i32) {
    %c0_i32 = arith.constant 0 : i32
    %c0_i32_0 = arith.constant 0 : i32
    %c0_i32_1 = arith.constant 0 : i32
    return %c0_i32, %c0_i32_0 : i32, i32
  }
  func.func @transform_7(%arg0: i32) -> (i32, i32) {
    %c0_i32 = arith.constant 0 : i32
    %c0_i32_0 = arith.constant 0 : i32
    return %arg0, %c0_i32 : i32, i32
  }
}

</mosaic_0001>

<llo_original>
// kernel: tpu_custom_call.1
$region0: #{tpu_custom_call.1}
  #allocation0 [shape = 'u32[]', space=smem, size = 0x4, offset = 0x4, fixed_abs, tag = 'smem constant byte address 0x4 - core index']
  #allocation1 [shape = 'u32[144,128]{1,0:T(1,128)}', space=vmem, size = 0x12000, scoped, tag = 'internal scratch']
  %s0 = inlined_call_operand.vmem [shape: f32[32,64], index: 0, kind: input, shape index: {}]
  %s1 = inlined_call_operand.vmem [shape: f32[11,64], index: 1, kind: input, shape index: {}]
  %s2 = inlined_call_operand.vmem [shape: f32[11,64], index: 2, kind: input, shape index: {}]
  %s3 = inlined_call_operand.vmem [shape: f32[8,64], index: 3, kind: input, shape index: {}]
  %s4 = inlined_call_operand.vmem [shape: f32[1,256], index: 4, kind: input, shape index: {}]
  %s5 = inlined_call_operand.vmem [shape: f32[64,256], index: 5, kind: input, shape index: {}]
  %s6 = inlined_call_operand.vmem [shape: f32[256,64], index: 6, kind: input, shape index: {}]
  %s7 = inlined_call_operand.hbm [shape: f32[32,64], index: 7, kind: output, shape index: {}]
  %s8 = sld [smem:[#allocation0]]
  $region61: #{tpu_custom_call.1} parent=0
    _
  %s10 = ssub.s32 1, %s8
  %s11 = scalar_select 0, %s10, %s8
  $region1: #{tpu_custom_call.1} parent=0
    #allocation2 [shape = 'u8[16384]{0}', space=vmem, size = 0x4000, scoped, tag = 'output window, operand 0']
    #allocation3 [shape = 's32[2]{0}', space=sflag, size = 0x8, scoped, tag = 'scoped memory for tpu_custom_call.1']
    %12 = vsyncpa [#allocation3], 0
    %s13 = scalar_lea.sflag [#allocation3], 1
    %14 = vsyncpa %s13, 0
    loop: start=0, step=1, limit=4
    $region2: #{tpu_custom_call.1} parent=1 // loop_pre_header
      _
    $region3: #{tpu_custom_call.1} parent=1 // loop_header
      %s16 = sphi 0, %s20
      %p17 = scmp.ge.s32.totalorder %s16, 4
      %s26 = sphi 0, %s28
      %s29 = sphi 0, %s26
      %s30 = sphi 0, %s29
      %s46 = sphi 0, %s30
      %s50 = sphi 0, %s50
      %s52 = sphi 0, %s50
      %s53 = sphi 0, %s52
      %s67 = sphi 0, %s53
      %s71 = sphi 0, %s71
      %s73 = sphi 0, %s71
      %s74 = sphi 0, %s73
      %s88 = sphi 0, %s74
      %s92 = sphi 0, %s92
      %s94 = sphi 0, %s92
      %s95 = sphi 0, %s94
      %s109 = sphi 0, %s95
      %s113 = sphi 0, %s113
      %s115 = sphi 0, %s113
      %s116 = sphi 0, %s115
      %s130 = sphi 0, %s116
      %s134 = sphi 0, %s134
      %s136 = sphi 0, %s134
      %s137 = sphi 0, %s136
      %s151 = sphi 0, %s137
      %s155 = sphi 0, %s155
      %s157 = sphi 0, %s155
      %s158 = sphi 0, %s157
      %s172 = sphi 0, %s158
      %s178 = sphi 0, %s180
      %s181 = sphi 0, %s178
      %s182 = sphi 0, %s181
      %s198 = sphi 0, %s182
    $region4: #{tpu_custom_call.1} parent=1 // loop_header_branch
      %19 = sbr.rel (%p17) target = $region8
    $region5: #{tpu_custom_call.1} parent=1 // loop_body
      %s21 = ssub.s32 %s16, 1
      %s22 = ssub.s32 %s16, 2
      %s23 = sadd.s32 %s16, 1
      %s24 = ssub.s32 %s16, %s23
      %p25 = scmp.eq.s32.totalorder %s24, 0
      %s27 = sadd.s32 %s26, 1
      %s28 = scalar_select %p25, %s26, %s27
      %p31 = pneg %p25
      %p32 = scmp.eq.s32.totalorder %s16, 1
      %p33 = por %p31, %p32
      %p34 = scmp.ne.s32.totalorder %s26, %s29
      %p35 = scmp.eq.s32.totalorder %s16, 0
      %p36 = por %p34, %p35
      %p37 = scmp.ne.s32.totalorder %s26, %s29
      %p38 = scmp.eq.s32.totalorder %s21, 1
      %p39 = por %p37, %p38
      %p40 = scmp.ne.s32.totalorder %s29, %s30
      %p41 = scmp.eq.s32.totalorder %s21, 0
      %p42 = por %p40, %p41
      %p43 = scmp.ne.s32.totalorder %s29, %s30
      %p44 = scmp.eq.s32.totalorder %s22, 1
      %p45 = por %p43, %p44
      %p47 = scmp.ne.s32.totalorder %s30, %s46
      %p48 = scmp.eq.s32.totalorder %s22, 0
      %p49 = por %p47, %p48
      %s51 = sadd.s32 %s50, 1
      %p54 = scmp.eq.s32.totalorder %s16, 1
      %p55 = scmp.ne.s32.totalorder %s50, %s52
      %p56 = scmp.eq.s32.totalorder %s16, 0
      %p57 = por %p55, %p56
      %p58 = scmp.ne.s32.totalorder %s50, %s52
      %p59 = scmp.eq.s32.totalorder %s21, 1
      %p60 = por %p58, %p59
      %p61 = scmp.ne.s32.totalorder %s52, %s53
      %p62 = scmp.eq.s32.totalorder %s21, 0
      %p63 = por %p61, %p62
      %p64 = scmp.ne.s32.totalorder %s52, %s53
      %p65 = scmp.eq.s32.totalorder %s22, 1
      %p66 = por %p64, %p65
      %p68 = scmp.ne.s32.totalorder %s53, %s67
      %p69 = scmp.eq.s32.totalorder %s22, 0
      %p70 = por %p68, %p69
      %s72 = sadd.s32 %s71, 1
      %p75 = scmp.eq.s32.totalorder %s16, 1
      %p76 = scmp.ne.s32.totalorder %s71, %s73
      %p77 = scmp.eq.s32.totalorder %s16, 0
      %p78 = por %p76, %p77
      %p79 = scmp.ne.s32.totalorder %s71, %s73
      %p80 = scmp.eq.s32.totalorder %s21, 1
      %p81 = por %p79, %p80
      %p82 = scmp.ne.s32.totalorder %s73, %s74
      %p83 = scmp.eq.s32.totalorder %s21, 0
      %p84 = por %p82, %p83
      %p85 = scmp.ne.s32.totalorder %s73, %s74
      %p86 = scmp.eq.s32.totalorder %s22, 1
      %p87 = por %p85, %p86
      %p89 = scmp.ne.s32.totalorder %s74, %s88
      %p90 = scmp.eq.s32.totalorder %s22, 0
      %p91 = por %p89, %p90
      %s93 = sadd.s32 %s92, 1
      %p96 = scmp.eq.s32.totalorder %s16, 1
      %p97 = scmp.ne.s32.totalorder %s92, %s94
      %p98 = scmp.eq.s32.totalorder %s16, 0
      %p99 = por %p97, %p98
      %p100 = scmp.ne.s32.totalorder %s92, %s94
      %p101 = scmp.eq.s32.totalorder %s21, 1
      %p102 = por %p100, %p101
      %p103 = scmp.ne.s32.totalorder %s94, %s95
      %p104 = scmp.eq.s32.totalorder %s21, 0
      %p105 = por %p103, %p104
      %p106 = scmp.ne.s32.totalorder %s94, %s95
      %p107 = scmp.eq.s32.totalorder %s22, 1
      %p108 = por %p106, %p107
      %p110 = scmp.ne.s32.totalorder %s95, %s109
      %p111 = scmp.eq.s32.totalorder %s22, 0
      %p112 = por %p110, %p111
      %s114 = sadd.s32 %s113, 1
      %p117 = scmp.eq.s32.totalorder %s16, 1
      %p118 = scmp.ne.s32.totalorder %s113, %s115
      %p119 = scmp.eq.s32.totalorder %s16, 0
      %p120 = por %p118, %p119
      %p121 = scmp.ne.s32.totalorder %s113, %s115
      %p122 = scmp.eq.s32.totalorder %s21, 1
      %p123 = por %p121, %p122
      %p124 = scmp.ne.s32.totalorder %s115, %s116
      %p125 = scmp.eq.s32.totalorder %s21, 0
      %p126 = por %p124, %p125
      %p127 = scmp.ne.s32.totalorder %s115, %s116
      %p128 = scmp.eq.s32.totalorder %s22, 1
      %p129 = por %p127, %p128
      %p131 = scmp.ne.s32.totalorder %s116, %s130
      %p132 = scmp.eq.s32.totalorder %s22, 0
      %p133 = por %p131, %p132
      %s135 = sadd.s32 %s134, 1
      %p138 = scmp.eq.s32.totalorder %s16, 1
      %p139 = scmp.ne.s32.totalorder %s134, %s136
      %p140 = scmp.eq.s32.totalorder %s16, 0
      %p141 = por %p139, %p140
      %p142 = scmp.ne.s32.totalorder %s134, %s136
      %p143 = scmp.eq.s32.totalorder %s21, 1
      %p144 = por %p142, %p143
      %p145 = scmp.ne.s32.totalorder %s136, %s137
      %p146 = scmp.eq.s32.totalorder %s21, 0
      %p147 = por %p145, %p146
      %p148 = scmp.ne.s32.totalorder %s136, %s137
      %p149 = scmp.eq.s32.totalorder %s22, 1
      %p150 = por %p148, %p149
      %p152 = scmp.ne.s32.totalorder %s137, %s151
      %p153 = scmp.eq.s32.totalorder %s22, 0
      %p154 = por %p152, %p153
      %s156 = sadd.s32 %s155, 1
      %p159 = scmp.eq.s32.totalorder %s16, 1
      %p160 = scmp.ne.s32.totalorder %s155, %s157
      %p161 = scmp.eq.s32.totalorder %s16, 0
      %p162 = por %p160, %p161
      %p163 = scmp.ne.s32.totalorder %s155, %s157
      %p164 = scmp.eq.s32.totalorder %s21, 1
      %p165 = por %p163, %p164
      %p166 = scmp.ne.s32.totalorder %s157, %s158
      %p167 = scmp.eq.s32.totalorder %s21, 0
      %p168 = por %p166, %p167
      %p169 = scmp.ne.s32.totalorder %s157, %s158
      %p170 = scmp.eq.s32.totalorder %s22, 1
      %p171 = por %p169, %p170
      %p173 = scmp.ne.s32.totalorder %s158, %s172
      %p174 = scmp.eq.s32.totalorder %s22, 0
      %p175 = por %p173, %p174
      %s176 = ssub.s32 %s16, %s23
      %p177 = scmp.eq.s32.totalorder %s176, 0
      %s179 = sadd.s32 %s178, 1
      %s180 = scalar_select %p177, %s178, %s179
      %p183 = pneg %p177
      %p184 = scmp.eq.s32.totalorder %s16, 1
      %p185 = por %p183, %p184
      %p186 = scmp.ne.s32.totalorder %s178, %s181
      %p187 = scmp.eq.s32.totalorder %s16, 0
      %p188 = por %p186, %p187
      %p189 = scmp.ne.s32.totalorder %s178, %s181
      %p190 = scmp.eq.s32.totalorder %s21, 1
      %p191 = por %p189, %p190
      %p192 = scmp.ne.s32.totalorder %s181, %s182
      %p193 = scmp.eq.s32.totalorder %s21, 0
      %p194 = por %p192, %p193
      %p195 = scmp.ne.s32.totalorder %s181, %s182
      %p196 = scmp.eq.s32.totalorder %s22, 1
      %p197 = por %p195, %p196
      %p199 = scmp.ne.s32.totalorder %s182, %s198
      %p200 = scmp.eq.s32.totalorder %s22, 0
      %p201 = por %p199, %p200
      %p202 = scmp.le.s32.totalorder 1, %s16
      %p203 = scmp.lt.s32.totalorder %s16, 3
      %p204 = pnand %p202, %p203
      %p205 = pneg %p204
      // Predicated region
      $region9: #{tpu_custom_call.1} parent=5 // pred_check
        _
      $region10: #{tpu_custom_call.1} parent=5 // pred_check_branch
        %207 = sbr.rel (%p204) target = $region12
      $region11: #{tpu_custom_call.1} parent=5 // pred_region
        %s208 = ssub.s32 %s16, 1
        // Predicated region
        $region13: #{tpu_custom_call.1} parent=11 // pred_check
          %p209 = pneg %p63
        $region14: #{tpu_custom_call.1} parent=11 // pred_check_branch
          %211 = sbr.rel (%p209) target = $region16
        $region15: #{tpu_custom_call.1} parent=11 // pred_region
          _
        $region16: #{tpu_custom_call.1} parent=11 // pred_fallthru
          _
        // Predicated region
        $region17: #{tpu_custom_call.1} parent=11 // pred_check
          %p212 = pneg %p84
        $region18: #{tpu_custom_call.1} parent=11 // pred_check_branch
          %214 = sbr.rel (%p212) target = $region20
        $region19: #{tpu_custom_call.1} parent=11 // pred_region
          _
        $region20: #{tpu_custom_call.1} parent=11 // pred_fallthru
          _
        // Predicated region
        $region21: #{tpu_custom_call.1} parent=11 // pred_check
          %p215 = pneg %p105
        $region22: #{tpu_custom_call.1} parent=11 // pred_check_branch
          %217 = sbr.rel (%p215) target = $region24
        $region23: #{tpu_custom_call.1} parent=11 // pred_region
          _
        $region24: #{tpu_custom_call.1} parent=11 // pred_fallthru
          _
        // Predicated region
        $region25: #{tpu_custom_call.1} parent=11 // pred_check
          %p218 = pneg %p126
        $region26: #{tpu_custom_call.1} parent=11 // pred_check_branch
          %220 = sbr.rel (%p218) target = $region28
        $region27: #{tpu_custom_call.1} parent=11 // pred_region
          _
        $region28: #{tpu_custom_call.1} parent=11 // pred_fallthru
          _
        // Predicated region
        $region29: #{tpu_custom_call.1} parent=11 // pred_check
          %p221 = pneg %p147
        $region30: #{tpu_custom_call.1} parent=11 // pred_check_branch
          %223 = sbr.rel (%p221) target = $region32
        $region31: #{tpu_custom_call.1} parent=11 // pred_region
          _
        $region32: #{tpu_custom_call.1} parent=11 // pred_fallthru
          _
        // Predicated region
        $region33: #{tpu_custom_call.1} parent=11 // pred_check
          %p224 = pneg %p168
        $region34: #{tpu_custom_call.1} parent=11 // pred_check_branch
          %226 = sbr.rel (%p224) target = $region36
        $region35: #{tpu_custom_call.1} parent=11 // pred_region
          _
        $region36: #{tpu_custom_call.1} parent=11 // pred_fallthru
          _
      $region12: #{tpu_custom_call.1} parent=5 // pred_fallthru
        _
      %p227 = scmp.lt.s32.totalorder %s16, 2
      // Predicated region
      $region37: #{tpu_custom_call.1} parent=5 // pred_check
        %p228 = pneg %p227
      $region38: #{tpu_custom_call.1} parent=5 // pred_check_branch
        %230 = sbr.rel (%p228) target = $region40
      $region39: #{tpu_custom_call.1} parent=5 // pred_region
        // Predicated region
        $region41: #{tpu_custom_call.1} parent=39 // pred_check
          %p231 = pneg %p36
        $region42: #{tpu_custom_call.1} parent=39 // pred_check_branch
          %233 = sbr.rel (%p231) target = $region44
        $region43: #{tpu_custom_call.1} parent=39 // pred_region
          %s234 = smul.u32 2, %s16
          %p235 = scmp.lt.s32.totalorder %s234, 3
          %s236 = scalar_select %p235, %s234, 3
          %s237 = smul.addr %s236, 8
          %s238 = scalar_lea.vmem %s0, %s237
          %s239 = smul.u32 2, %s16
        $region44: #{tpu_custom_call.1} parent=39 // pred_fallthru
          _
      $region40: #{tpu_custom_call.1} parent=5 // pred_fallthru
        _
      %p240 = scmp.le.s32.totalorder 1, %s16
      %p241 = scmp.lt.s32.totalorder %s16, 3
      %p242 = pnand %p240, %p241
      %p243 = pneg %p242
      // Predicated region
      $region45: #{tpu_custom_call.1} parent=5 // pred_check
        _
      $region46: #{tpu_custom_call.1} parent=5 // pred_check_branch
        %245 = sbr.rel (%p242) target = $region48
      $region47: #{tpu_custom_call.1} parent=5 // pred_region
        %s246 = ssub.s32 %s16, 1
        %s247 = smul.u32 2, %s21
        %p248 = scmp.lt.s32.totalorder %s247, 3
        %s249 = scalar_select %p248, %s247, 3
        %s250 = smul.addr %s249, 8
        %s251 = scalar_lea.vmem %s0, %s250
        %p252 = pneg %p42
        %p253 = pneg %p39
        %p254 = pneg %p63
        %p255 = pneg %p60
        %p256 = pneg %p84
        %p257 = pneg %p81
        %p258 = pneg %p105
        %p259 = pneg %p102
        %p260 = pneg %p126
        %p261 = pneg %p123
        %p262 = pneg %p147
        %p263 = pneg %p144
        %p264 = pneg %p168
        %p265 = pneg %p165
        %p266 = pneg %p194
        %p267 = pneg %p191
        %s268 = sand.u32 %s181, 1
        %s269 = scalar_lea.sflag [#allocation3], %s268
        %s270 = sand.u32 %s181, 1
        %s271 = smul.addr %s270, 16
        %s272 = scalar_lea.vmem [#allocation2], %s271
        %s273 = smul.u32 2, %s21
        %p274 = scmp.lt.s32.totalorder %s273, 3
        %s275 = scalar_select %p274, %s273, 3
        %s276 = smul.addr %s275, 8
        %s277 = scalar_lea.vmem %s0, %s276
        %s278 = smul.u32 2, %s21
        %s279 = smul.u32 2, %s21
        %v280 = vld [vmem:[%s277] sm:$0xff]
        %v281 = vld [vmem:[%s277 + $0x8] sm:$0xff]
        %v282 = vld [vmem:[%s3] sm:$0x1]
        %v283 = vld [vmem:[%s3 + $0x1] sm:$0x1]
        %v284 = vld [vmem:[%s3 + $0x2] sm:$0x1]
        %v285 = vld [vmem:[%s3 + $0x3] sm:$0x1]
        %v286 = vld [vmem:[%s3 + $0x4] sm:$0x1]
        %v287 = vld [vmem:[%s3 + $0x5] sm:$0x1]
        %v288 = vld [vmem:[%s3 + $0x6] sm:$0x1]
        %v289 = vld [vmem:[%s3 + $0x7] sm:$0x1]
        %v290 = vld [vmem:[%s4] sm:$0x3]
        %v291 = vlaneseq
        %v292 = vshrl.u32 %v291, 7
        %v293 = vadd.s32 %v292, 8
        %vm294 = vcmp.lt.s32.totalorder %v292, 0
        %v295 = vsub.s32 0, %v292
        %v296 = vsel %vm294, %v295, %v292
        %v297 = vshrl.u32 %v296, 4
        %v298 = vand.u32 %v296, 15
        %v299 = vsub.s32 0, %v298
        %v300 = vsel %vm294, %v299, %v298
        %vm301 = vcmp.lt.s32.totalorder %v293, 0
        %v302 = vsub.s32 0, %v293
        %v303 = vsel %vm301, %v302, %v293
        %v304 = vshrl.u32 %v303, 4
        %v305 = vand.u32 %v303, 15
        %v306 = vsub.s32 0, %v305
        %v307 = vsel %vm301, %v306, %v305
        %vm308 = vcmp.ge.s32.totalorder %v300, 5
        %vm309 = vcmp.ge.s32.totalorder %v307, 5
        %v310 = vsel %vm308, 1, 0
        %v311 = vsel %vm309, 1, 0
        %v312 = vcvt.s32.f32 %v310
        %v313 = vcvt.s32.f32 %v311
        %vm314 = vcmp.ge.s32.totalorder %v300, 4
        %vm315 = vcmp.ge.s32.totalorder %v307, 4
        %v316 = vsel %vm314, 1, 0
        %v317 = vsel %vm315, 1, 0
        %v318 = vcvt.s32.f32 %v316
        %v319 = vcvt.s32.f32 %v317
        %vm320 = vcmp.ge.s32.totalorder %v300, 3
        %vm321 = vcmp.ge.s32.totalorder %v307, 3
        %v322 = vsel %vm320, 1, 0
        %v323 = vsel %vm321, 1, 0
        %v324 = vcvt.s32.f32 %v322
        %v325 = vcvt.s32.f32 %v323
        %vm326 = vcmp.ge.s32.totalorder %v300, 2
        %vm327 = vcmp.ge.s32.totalorder %v307, 2
        %v328 = vsel %vm326, 1, 0
        %v329 = vsel %vm327, 1, 0
        %v330 = vcvt.s32.f32 %v328
        %v331 = vcvt.s32.f32 %v329
        %vm332 = vcmp.ge.s32.totalorder %v300, 1
        %vm333 = vcmp.ge.s32.totalorder %v307, 1
        %v334 = vsel %vm332, 1, 0
        %v335 = vsel %vm333, 1, 0
        %v336 = vcvt.s32.f32 %v334
        %v337 = vcvt.s32.f32 %v335
        %vm338 = vcmp.lt.s32.totalorder %v300, 15
        %vm339 = vcmp.lt.s32.totalorder %v307, 15
        %v340 = vsel %vm338, 1, 0
        %v341 = vsel %vm339, 1, 0
        %v342 = vcvt.s32.f32 %v340
        %v343 = vcvt.s32.f32 %v341
        %vm344 = vcmp.lt.s32.totalorder %v300, 14
        %vm345 = vcmp.lt.s32.totalorder %v307, 14
        %v346 = vsel %vm344, 1, 0
        %v347 = vsel %vm345, 1, 0
        %v348 = vcvt.s32.f32 %v346
        %v349 = vcvt.s32.f32 %v347
        %vm350 = vcmp.lt.s32.totalorder %v300, 13
        %vm351 = vcmp.lt.s32.totalorder %v307, 13
        %v352 = vsel %vm350, 1, 0
        %v353 = vsel %vm351, 1, 0
        %v354 = vcvt.s32.f32 %v352
        %v355 = vcvt.s32.f32 %v353
        %vm356 = vcmp.lt.s32.totalorder %v300, 12
        %vm357 = vcmp.lt.s32.totalorder %v307, 12
        %v358 = vsel %vm356, 1, 0
        %v359 = vsel %vm357, 1, 0
        %v360 = vcvt.s32.f32 %v358
        %v361 = vcvt.s32.f32 %v359
        %vm362 = vcmp.lt.s32.totalorder %v300, 11
        %vm363 = vcmp.lt.s32.totalorder %v307, 11
        %v364 = vsel %vm362, 1, 0
        %v365 = vsel %vm363, 1, 0
        %v366 = vcvt.s32.f32 %v364
        %v367 = vcvt.s32.f32 %v365
        %v368 = vlaneseq
        %v369 = vshrl.u32 %v368, 7
        %v370 = vsub.s32 0, %v369
        %v371 = vrot.slane %v282, %v370
        %v372 = vmul.f32 %v280, %v371
        %v373 = vmul.f32 %v281, %v371
        %v374 = vlaneseq
        %v375 = vshrl.u32 %v374, 7
        %v376 = vsub.s32 0, %v375
        %v377 = vrot.slane %v283, %v376
        %v378 = vadd.f32 %v372, %v377
        %v379 = vadd.f32 %v373, %v377
        %v380 = vld [vmem:[%s1 + $0x5] sm:$0x1]
        %v381 = vlaneseq
        %v382 = vshrl.u32 %v381, 7
        %v383 = vsub.s32 0, %v382
        %v384 = vrot.slane %v380, %v383
        %v385 = vmul.f32 %v280, %v384
        %v386 = vmul.f32 %v281, %v384
        %v387 = vrot.slane %v280, 3
        %v388 = vrot.slane %v281, 3
        %vm389 = vcmp.lt.s32.totalorder %v292, 5
        %v390 = vsel %vm389, %v387, %v388
        %v391 = vsel %vm389, %v388, %v387
        %v392 = vld [vmem:[%s1] sm:$0x1]
        %v393 = vlaneseq
        %v394 = vshrl.u32 %v393, 7
        %v395 = vsub.s32 0, %v394
        %v396 = vrot.slane %v392, %v395
        %v397 = vmul.f32 %v312, %v396
        %v398 = vmul.f32 %v313, %v396
        %v399 = vmul.f32 %v391, %v397
        %v400 = vmul.f32 %v390, %v398
        %v401 = vadd.f32 %v385, %v399
        %v402 = vadd.f32 %v386, %v400
        %v403 = vrot.slane %v280, 4
        %v404 = vrot.slane %v281, 4
        %vm405 = vcmp.lt.s32.totalorder %v292, 4
        %v406 = vsel %vm405, %v403, %v404
        %v407 = vsel %vm405, %v404, %v403
        %v408 = vld [vmem:[%s1 + $0x1] sm:$0x1]
        %v409 = vlaneseq
        %v410 = vshrl.u32 %v409, 7
        %v411 = vsub.s32 0, %v410
        %v412 = vrot.slane %v408, %v411
        %v413 = vmul.f32 %v318, %v412
        %v414 = vmul.f32 %v319, %v412
        %v415 = vmul.f32 %v407, %v413
        %v416 = vmul.f32 %v406, %v414
        %v417 = vadd.f32 %v401, %v415
        %v418 = vadd.f32 %v402, %v416
        %v419 = vrot.slane %v280, 5
        %v420 = vrot.slane %v281, 5
        %vm421 = vcmp.lt.s32.totalorder %v292, 3
        %v422 = vsel %vm421, %v419, %v420
        %v423 = vsel %vm421, %v420, %v419
        %v424 = vld [vmem:[%s1 + $0x2] sm:$0x1]
        %v425 = vlaneseq
        %v426 = vshrl.u32 %v425, 7
        %v427 = vsub.s32 0, %v426
        %v428 = vrot.slane %v424, %v427
        %v429 = vmul.f32 %v324, %v428
        %v430 = vmul.f32 %v325, %v428
        %v431 = vmul.f32 %v423, %v429
        %v432 = vmul.f32 %v422, %v430
        %v433 = vadd.f32 %v417, %v431
        %v434 = vadd.f32 %v418, %v432
        %v435 = vrot.slane %v280, 6
        %v436 = vrot.slane %v281, 6
        %vm437 = vcmp.lt.s32.totalorder %v292, 2
        %v438 = vsel %vm437, %v435, %v436
        %v439 = vsel %vm437, %v436, %v435
        %v440 = vld [vmem:[%s1 + $0x3] sm:$0x1]
        %v441 = vlaneseq
        %v442 = vshrl.u32 %v441, 7
        %v443 = vsub.s32 0, %v442
        %v444 = vrot.slane %v440, %v443
        %v445 = vmul.f32 %v330, %v444
        %v446 = vmul.f32 %v331, %v444
        %v447 = vmul.f32 %v439, %v445
        %v448 = vmul.f32 %v438, %v446
        %v449 = vadd.f32 %v433, %v447
        %v450 = vadd.f32 %v434, %v448
        %v451 = vrot.slane %v280, 7
        %v452 = vrot.slane %v281, 7
        %vm453 = vcmp.lt.s32.totalorder %v292, 1
        %v454 = vsel %vm453, %v451, %v452
        %v455 = vsel %vm453, %v452, %v451
        %v456 = vld [vmem:[%s1 + $0x4] sm:$0x1]
        %v457 = vlaneseq
        %v458 = vshrl.u32 %v457, 7
        %v459 = vsub.s32 0, %v458
        %v460 = vrot.slane %v456, %v459
        %v461 = vmul.f32 %v336, %v460
        %v462 = vmul.f32 %v337, %v460
        %v463 = vmul.f32 %v455, %v461
        %v464 = vmul.f32 %v454, %v462
        %v465 = vadd.f32 %v449, %v463
        %v466 = vadd.f32 %v450, %v464
        %v467 = vrot.slane %v280, 1
        %v468 = vrot.slane %v281, 1
        %vm469 = vcmp.lt.s32.totalorder %v292, 7
        %v470 = vsel %vm469, %v467, %v468
        %v471 = vsel %vm469, %v468, %v467
        %v472 = vld [vmem:[%s1 + $0x6] sm:$0x1]
        %v473 = vlaneseq
        %v474 = vshrl.u32 %v473, 7
        %v475 = vsub.s32 0, %v474
        %v476 = vrot.slane %v472, %v475
        %v477 = vmul.f32 %v342, %v476
        %v478 = vmul.f32 %v343, %v476
        %v479 = vmul.f32 %v470, %v477
        %v480 = vmul.f32 %v471, %v478
        %v481 = vadd.f32 %v465, %v479
        %v482 = vadd.f32 %v466, %v480
        %v483 = vrot.slane %v280, 2
        %v484 = vrot.slane %v281, 2
        %vm485 = vcmp.lt.s32.totalorder %v292, 6
        %v486 = vsel %vm485, %v483, %v484
        %v487 = vsel %vm485, %v484, %v483
        %v488 = vld [vmem:[%s1 + $0x7] sm:$0x1]
        %v489 = vlaneseq
        %v490 = vshrl.u32 %v489, 7
        %v491 = vsub.s32 0, %v490
        %v492 = vrot.slane %v488, %v491
        %v493 = vmul.f32 %v348, %v492
        %v494 = vmul.f32 %v349, %v492
        %v495 = vmul.f32 %v486, %v493
        %v496 = vmul.f32 %v487, %v494
        %v497 = vadd.f32 %v481, %v495
        %v498 = vadd.f32 %v482, %v496
        %v499 = vld [vmem:[%s1 + $0x8] sm:$0x1]
        %v500 = vlaneseq
        %v501 = vshrl.u32 %v500, 7
        %v502 = vsub.s32 0, %v501
        %v503 = vrot.slane %v499, %v502
        %v504 = vmul.f32 %v354, %v503
        %v505 = vmul.f32 %v355, %v503
        %v506 = vmul.f32 %v390, %v504
        %v507 = vmul.f32 %v391, %v505
        %v508 = vadd.f32 %v497, %v506
        %v509 = vadd.f32 %v498, %v507
        %v510 = vld [vmem:[%s1 + $0x9] sm:$0x1]
        %v511 = vlaneseq
        %v512 = vshrl.u32 %v511, 7
        %v513 = vsub.s32 0, %v512
        %v514 = vrot.slane %v510, %v513
        %v515 = vmul.f32 %v360, %v514
        %v516 = vmul.f32 %v361, %v514
        %v517 = vmul.f32 %v406, %v515
        %v518 = vmul.f32 %v407, %v516
        %v519 = vadd.f32 %v508, %v517
        %v520 = vadd.f32 %v509, %v518
        %v521 = vld [vmem:[%s1 + $0xa] sm:$0x1]
        %v522 = vlaneseq
        %v523 = vshrl.u32 %v522, 7
        %v524 = vsub.s32 0, %v523
        %v525 = vrot.slane %v521, %v524
        %v526 = vmul.f32 %v366, %v525
        %v527 = vmul.f32 %v367, %v525
        %v528 = vmul.f32 %v422, %v526
        %v529 = vmul.f32 %v423, %v527
        %v530 = vadd.f32 %v519, %v528
        %v531 = vadd.f32 %v520, %v529
        %v532 = vadd.f32 %v378, %v530
        %v533 = vadd.f32 %v379, %v531
        %v534 = vlaneseq
        %v535 = vshrl.u32 %v534, 7
        %v536 = vsub.s32 0, %v535
        %v537 = vrot.slane %v284, %v536
        %v538 = vmul.f32 %v280, %v537
        %v539 = vmul.f32 %v281, %v537
        %v540 = vlaneseq
        %v541 = vshrl.u32 %v540, 7
        %v542 = vsub.s32 0, %v541
        %v543 = vrot.slane %v285, %v542
        %v544 = vadd.f32 %v538, %v543
        %v545 = vadd.f32 %v539, %v543
        %v546 = vsub.f32 %v532, %v544
        %v547 = vsub.f32 %v533, %v545
        %v548 = vlaneseq
        %v549 = vshrl.u32 %v548, 7
        %v550 = vsub.s32 0, %v549
        %v551 = vrot.slane %v286, %v550
        %v552 = vmul.f32 %v551, %v546
        %v553 = vmul.f32 %v551, %v547
        %v554 = vadd.f32 %v280, %v552
        %v555 = vadd.f32 %v281, %v553
        %v556 = vld [vmem:[%s2 + $0x5] sm:$0x1]
        %v557 = vlaneseq
        %v558 = vshrl.u32 %v557, 7
        %v559 = vsub.s32 0, %v558
        %v560 = vrot.slane %v556, %v559
        %v561 = vmul.f32 %v554, %v560
        %v562 = vmul.f32 %v555, %v560
        %v563 = vrot.slane %v554, 3
        %v564 = vrot.slane %v555, 3
        %v565 = vsel %vm389, %v563, %v564
        %v566 = vsel %vm389, %v564, %v563
        %v567 = vld [vmem:[%s2] sm:$0x1]
        %v568 = vlaneseq
        %v569 = vshrl.u32 %v568, 7
        %v570 = vsub.s32 0, %v569
        %v571 = vrot.slane %v567, %v570
        %v572 = vmul.f32 %v312, %v571
        %v573 = vmul.f32 %v313, %v571
        %v574 = vmul.f32 %v566, %v572
        %v575 = vmul.f32 %v565, %v573
        %v576 = vadd.f32 %v561, %v574
        %v577 = vadd.f32 %v562, %v575
        %v578 = vrot.slane %v554, 4
        %v579 = vrot.slane %v555, 4
        %v580 = vsel %vm405, %v578, %v579
        %v581 = vsel %vm405, %v579, %v578
        %v582 = vld [vmem:[%s2 + $0x1] sm:$0x1]
        %v583 = vlaneseq
        %v584 = vshrl.u32 %v583, 7
        %v585 = vsub.s32 0, %v584
        %v586 = vrot.slane %v582, %v585
        %v587 = vmul.f32 %v318, %v586
        %v588 = vmul.f32 %v319, %v586
        %v589 = vmul.f32 %v581, %v587
        %v590 = vmul.f32 %v580, %v588
        %v591 = vadd.f32 %v576, %v589
        %v592 = vadd.f32 %v577, %v590
        %v593 = vrot.slane %v554, 5
        %v594 = vrot.slane %v555, 5
        %v595 = vsel %vm421, %v593, %v594
        %v596 = vsel %vm421, %v594, %v593
        %v597 = vld [vmem:[%s2 + $0x2] sm:$0x1]
        %v598 = vlaneseq
        %v599 = vshrl.u32 %v598, 7
        %v600 = vsub.s32 0, %v599
        %v601 = vrot.slane %v597, %v600
        %v602 = vmul.f32 %v324, %v601
        %v603 = vmul.f32 %v325, %v601
        %v604 = vmul.f32 %v596, %v602
        %v605 = vmul.f32 %v595, %v603
        %v606 = vadd.f32 %v591, %v604
        %v607 = vadd.f32 %v592, %v605
        %v608 = vrot.slane %v554, 6
        %v609 = vrot.slane %v555, 6
        %v610 = vsel %vm437, %v608, %v609
        %v611 = vsel %vm437, %v609, %v608
        %v612 = vld [vmem:[%s2 + $0x3] sm:$0x1]
        %v613 = vlaneseq
        %v614 = vshrl.u32 %v613, 7
        %v615 = vsub.s32 0, %v614
        %v616 = vrot.slane %v612, %v615
        %v617 = vmul.f32 %v330, %v616
        %v618 = vmul.f32 %v331, %v616
        %v619 = vmul.f32 %v611, %v617
        %v620 = vmul.f32 %v610, %v618
        %v621 = vadd.f32 %v606, %v619
        %v622 = vadd.f32 %v607, %v620
        %v623 = vrot.slane %v554, 7
        %v624 = vrot.slane %v555, 7
        %v625 = vsel %vm453, %v623, %v624
        %v626 = vsel %vm453, %v624, %v623
        %v627 = vld [vmem:[%s2 + $0x4] sm:$0x1]
        %v628 = vlaneseq
        %v629 = vshrl.u32 %v628, 7
        %v630 = vsub.s32 0, %v629
        %v631 = vrot.slane %v627, %v630
        %v632 = vmul.f32 %v336, %v631
        %v633 = vmul.f32 %v337, %v631
        %v634 = vmul.f32 %v626, %v632
        %v635 = vmul.f32 %v625, %v633
        %v636 = vadd.f32 %v621, %v634
        %v637 = vadd.f32 %v622, %v635
        %v638 = vrot.slane %v554, 1
        %v639 = vrot.slane %v555, 1
        %v640 = vsel %vm469, %v638, %v639
        %v641 = vsel %vm469, %v639, %v638
        %v642 = vld [vmem:[%s2 + $0x6] sm:$0x1]
        %v643 = vlaneseq
        %v644 = vshrl.u32 %v643, 7
        %v645 = vsub.s32 0, %v644
        %v646 = vrot.slane %v642, %v645
        %v647 = vmul.f32 %v342, %v646
        %v648 = vmul.f32 %v343, %v646
        %v649 = vmul.f32 %v640, %v647
        %v650 = vmul.f32 %v641, %v648
        %v651 = vadd.f32 %v636, %v649
        %v652 = vadd.f32 %v637, %v650
        %v653 = vrot.slane %v554, 2
        %v654 = vrot.slane %v555, 2
        %v655 = vsel %vm485, %v653, %v654
        %v656 = vsel %vm485, %v654, %v653
        %v657 = vld [vmem:[%s2 + $0x7] sm:$0x1]
        %v658 = vlaneseq
        %v659 = vshrl.u32 %v658, 7
        %v660 = vsub.s32 0, %v659
        %v661 = vrot.slane %v657, %v660
        %v662 = vmul.f32 %v348, %v661
        %v663 = vmul.f32 %v349, %v661
        %v664 = vmul.f32 %v655, %v662
        %v665 = vmul.f32 %v656, %v663
        %v666 = vadd.f32 %v651, %v664
        %v667 = vadd.f32 %v652, %v665
        %v668 = vld [vmem:[%s2 + $0x8] sm:$0x1]
        %v669 = vlaneseq
        %v670 = vshrl.u32 %v669, 7
        %v671 = vsub.s32 0, %v670
        %v672 = vrot.slane %v668, %v671
        %v673 = vmul.f32 %v354, %v672
        %v674 = vmul.f32 %v355, %v672
        %v675 = vmul.f32 %v565, %v673
        %v676 = vmul.f32 %v566, %v674
        %v677 = vadd.f32 %v666, %v675
        %v678 = vadd.f32 %v667, %v676
        %v679 = vld [vmem:[%s2 + $0x9] sm:$0x1]
        %v680 = vlaneseq
        %v681 = vshrl.u32 %v680, 7
        %v682 = vsub.s32 0, %v681
        %v683 = vrot.slane %v679, %v682
        %v684 = vmul.f32 %v360, %v683
        %v685 = vmul.f32 %v361, %v683
        %v686 = vmul.f32 %v580, %v684
        %v687 = vmul.f32 %v581, %v685
        %v688 = vadd.f32 %v677, %v686
        %v689 = vadd.f32 %v678, %v687
        %v690 = vld [vmem:[%s2 + $0xa] sm:$0x1]
        %v691 = vlaneseq
        %v692 = vshrl.u32 %v691, 7
        %v693 = vsub.s32 0, %v692
        %v694 = vrot.slane %v690, %v693
        %v695 = vmul.f32 %v366, %v694
        %v696 = vmul.f32 %v367, %v694
        %v697 = vmul.f32 %v595, %v695
        %v698 = vmul.f32 %v596, %v696
        %v699 = vadd.f32 %v688, %v697
        %v700 = vadd.f32 %v689, %v698
        %v701 = vlaneseq
        %v702 = vshrl.u32 %v701, 7
        %v703 = vsub.s32 0, %v702
        %v704 = vrot.slane %v287, %v703
        %v705 = vadd.f32 %v699, %v704
        %v706 = vadd.f32 %v700, %v704
        %v707 = vld [vmem:[%s5] sm:$0xff]
        %v708 = vld [vmem:[%s5 + $0x8] sm:$0xff]
        %v709 = vld [vmem:[%s5 + $0x10] sm:$0xff]
        %v710 = vld [vmem:[%s5 + $0x18] sm:$0xff]
        %v711 = vld [vmem:[%s5 + $0x20] sm:$0xff]
        %v712 = vld [vmem:[%s5 + $0x28] sm:$0xff]
        %v713 = vld [vmem:[%s5 + $0x30] sm:$0xff]
        %v714 = vld [vmem:[%s5 + $0x38] sm:$0xff]
        %v715 = vld [vmem:[%s5 + $0x40] sm:$0xff]
        %v716 = vld [vmem:[%s5 + $0x48] sm:$0xff]
        %v717 = vld [vmem:[%s5 + $0x50] sm:$0xff]
        %v718 = vld [vmem:[%s5 + $0x58] sm:$0xff]
        %v719 = vld [vmem:[%s5 + $0x60] sm:$0xff]
        %v720 = vld [vmem:[%s5 + $0x68] sm:$0xff]
        %v721 = vld [vmem:[%s5 + $0x70] sm:$0xff]
        %v722 = vld [vmem:[%s5 + $0x78] sm:$0xff]
        %v724 = vlaneseq
        %v725 = vshrl.u32 %v724, 7
        %v726 = vsub.s32 0, %v725
        %v727 = vrot.slane %v290, %v726
        %v728 = vlaneseq
        %v729 = vshrl.u32 %v728, 7
        %v730 = vsub.s32 1, %v729
        %v731 = vrot.slane %v290, %v730
        %vm734 = vcmask 523264
        %v736 = vsel %vm734, %v705, 0
        %v739 = vsel %vm734, %v706, 0
        %741 = vmatprep.subr.mxu0 %v708
        %742 = vmatpush1.msra.mxu0 %v707
        %743 = vmatprep.subr.mxu0 %v710
        %744 = vmatpush1.msra.mxu0 %v709
        %745 = vmatprep.subr.mxu0 %v712
        %746 = vmatpush1.msra.mxu0 %v711
        %747 = vmatprep.subr.mxu0 %v714
        %748 = vmatpush1.msra.mxu0 %v713
        %749 = vmatprep.subr.mxu0 %v716
        %750 = vmatpush1.msra.mxu0 %v715
        %751 = vmatprep.subr.mxu0 %v718
        %752 = vmatpush1.msra.mxu0 %v717
        %753 = vmatprep.subr.mxu0 %v720
        %754 = vmatpush1.msra.mxu0 %v719
        %755 = vmatprep.subr.mxu0 %v722
        %756 = vmatpush1.msra.mxu0 %v721
        %757 = vmatprep.subr.mxu0 0.0
        %758 = vmatpush1.msra.mxu0 0.0
        %759 = vmatprep.subr.mxu0 0.0
        %760 = vmatpush1.msra.mxu0 0.0
        %761 = vmatprep.subr.mxu0 0.0
        %762 = vmatpush1.msra.mxu0 0.0
        %763 = vmatprep.subr.mxu0 0.0
        %764 = vmatpush1.msra.mxu0 0.0
        %765 = vmatprep.subr.mxu0 0.0
        %766 = vmatpush1.msra.mxu0 0.0
        %767 = vmatprep.subr.mxu0 0.0
        %768 = vmatpush1.msra.mxu0 0.0
        %769 = vmatprep.subr.mxu0 0.0
        %770 = vmatpush1.msra.mxu0 0.0
        %771 = vmatprep.subr.mxu0 0.0
        %772 = vmatpush1.msra.mxu0 0.0
        %773 = vmatprep.subr.mxu0 0.0
        %774 = vmatpush1.msra.mxu0 0.0
        %775 = vmatprep.subr.mxu0 0.0
        %776 = vmatpush1.msra.mxu0 0.0
        %777 = vmatprep.subr.mxu0 0.0
        %778 = vmatpush1.msra.mxu0 0.0
        %779 = vmatprep.subr.mxu0 0.0
        %780 = vmatpush1.msra.mxu0 0.0
        %781 = vmatprep.subr.mxu0 0.0
        %782 = vmatpush1.msra.mxu0 0.0
        %783 = vmatprep.subr.mxu0 0.0
        %784 = vmatpush1.msra.mxu0 0.0
        %785 = vmatprep.subr.mxu0 0.0
        %786 = vmatpush1.msra.mxu0 0.0
        %787 = vmatprep.subr.mxu0 0.0
        %788 = vmatpush1.msra.mxu0 0.0
        %789 = vmatprep.subr.mxu0 0.0
        %790 = vmatpush1.msra.mxu0 0.0
        %791 = vmatprep.subr.mxu0 0.0
        %792 = vmatpush1.msra.mxu0 0.0
        %793 = vmatprep.subr.mxu0 0.0
        %794 = vmatpush1.msra.mxu0 0.0
        %795 = vmatprep.subr.mxu0 0.0
        %796 = vmatpush1.msra.mxu0 0.0
        %797 = vmatprep.subr.mxu0 0.0
        %798 = vmatpush1.msra.mxu0 0.0
        %799 = vmatprep.subr.mxu0 0.0
        %800 = vmatpush1.msra.mxu0 0.0
        %801 = vmatprep.subr.mxu0 0.0
        %802 = vmatpush1.msra.mxu0 0.0
        %803 = vmatprep.subr.mxu0 0.0
        %804 = vmatpush1.msra.mxu0 0.0
        %805 = vmatprep.mubr.f32.mxu0 0.0
        %806 = vmatmul.mubr.f32.gmra.mrb[0].mxu0 %v736
        %v807 = vpop.f32.mrb[0].mxu0
        %v808 = vadd.f32 %v727, %v807
        %v809 = vpop.f32.mrb[0].mxu0
        %v810 = vadd.f32 %v731, %v809
        %811 = vmatprep.mubr.f32.mxu0 0.0
        %812 = vmatmul.mubr.f32.gmra.mrb[0].mxu0 %v739
        %v813 = vpop.f32.mrb[0].mxu0
        %v814 = vadd.f32 %v727, %v813
        %v815 = vpop.f32.mrb[0].mxu0
        %v816 = vadd.f32 %v731, %v815
        %817 = vdwg.mxu0
        %v818 = vmul.f32 %v808, 0.5
        %v819 = vmul.f32 %v810, 0.5
        %v820 = vmul.f32 %v814, 0.5
        %v821 = vmul.f32 %v816, 0.5
        %v822 = vmul.f32 %v808, 0.70710677
        %v823 = vmul.f32 %v810, 0.70710677
        %v824 = vmul.f32 %v814, 0.70710677
        %v825 = vmul.f32 %v816, 0.70710677
        %v826 = verf.f32.pop %v822
        %v827 = verf.f32.pop %v823
        %v828 = verf.f32.pop %v824
        %v829 = verf.f32.pop %v825
        %v830 = vadd.f32 %v826, 1.0
        %v831 = vadd.f32 %v827, 1.0
        %v832 = vadd.f32 %v828, 1.0
        %v833 = vadd.f32 %v829, 1.0
        %v834 = vmul.f32 %v818, %v830
        %v835 = vmul.f32 %v819, %v831
        %v836 = vmul.f32 %v820, %v832
        %v837 = vmul.f32 %v821, %v833
        %v838 = vld [vmem:[%s6] sm:$0xff]
        %v839 = vld [vmem:[%s6 + $0x8] sm:$0xff]
        %v840 = vld [vmem:[%s6 + $0x10] sm:$0xff]
        %v841 = vld [vmem:[%s6 + $0x18] sm:$0xff]
        %v842 = vld [vmem:[%s6 + $0x20] sm:$0xff]
        %v843 = vld [vmem:[%s6 + $0x28] sm:$0xff]
        %v844 = vld [vmem:[%s6 + $0x30] sm:$0xff]
        %v845 = vld [vmem:[%s6 + $0x38] sm:$0xff]
        %v846 = vld [vmem:[%s6 + $0x40] sm:$0xff]
        %v847 = vld [vmem:[%s6 + $0x48] sm:$0xff]
        %v848 = vld [vmem:[%s6 + $0x50] sm:$0xff]
        %v849 = vld [vmem:[%s6 + $0x58] sm:$0xff]
        %v850 = vld [vmem:[%s6 + $0x60] sm:$0xff]
        %v851 = vld [vmem:[%s6 + $0x68] sm:$0xff]
        %v852 = vld [vmem:[%s6 + $0x70] sm:$0xff]
        %v853 = vld [vmem:[%s6 + $0x78] sm:$0xff]
        %v854 = vld [vmem:[%s6 + $0x80] sm:$0xff]
        %v855 = vld [vmem:[%s6 + $0x88] sm:$0xff]
        %v856 = vld [vmem:[%s6 + $0x90] sm:$0xff]
        %v857 = vld [vmem:[%s6 + $0x98] sm:$0xff]
        %v858 = vld [vmem:[%s6 + $0xa0] sm:$0xff]
        %v859 = vld [vmem:[%s6 + $0xa8] sm:$0xff]
        %v860 = vld [vmem:[%s6 + $0xb0] sm:$0xff]
        %v861 = vld [vmem:[%s6 + $0xb8] sm:$0xff]
        %v862 = vld [vmem:[%s6 + $0xc0] sm:$0xff]
        %v863 = vld [vmem:[%s6 + $0xc8] sm:$0xff]
        %v864 = vld [vmem:[%s6 + $0xd0] sm:$0xff]
        %v865 = vld [vmem:[%s6 + $0xd8] sm:$0xff]
        %v866 = vld [vmem:[%s6 + $0xe0] sm:$0xff]
        %v867 = vld [vmem:[%s6 + $0xe8] sm:$0xff]
        %v868 = vld [vmem:[%s6 + $0xf0] sm:$0xff]
        %v869 = vld [vmem:[%s6 + $0xf8] sm:$0xff]
        %v870 = vlaneseq
        %v871 = vshrl.u32 %v870, 7
        %v872 = vsub.s32 0, %v871
        %v873 = vrot.slane %v288, %v872
        %874 = vmatprep.subr.mxu0 0.0
        %875 = vmatpush1.msra.mxu0 %v838
        %876 = vmatprep.subr.mxu0 0.0
        %877 = vmatpush1.msra.mxu0 %v839
        %878 = vmatprep.subr.mxu0 0.0
        %879 = vmatpush1.msra.mxu0 %v840
        %880 = vmatprep.subr.mxu0 0.0
        %881 = vmatpush1.msra.mxu0 %v841
        %882 = vmatprep.subr.mxu0 0.0
        %883 = vmatpush1.msra.mxu0 %v842
        %884 = vmatprep.subr.mxu0 0.0
        %885 = vmatpush1.msra.mxu0 %v843
        %886 = vmatprep.subr.mxu0 0.0
        %887 = vmatpush1.msra.mxu0 %v844
        %888 = vmatprep.subr.mxu0 0.0
        %889 = vmatpush1.msra.mxu0 %v845
        %890 = vmatprep.subr.mxu0 0.0
        %891 = vmatpush1.msra.mxu0 %v846
        %892 = vmatprep.subr.mxu0 0.0
        %893 = vmatpush1.msra.mxu0 %v847
        %894 = vmatprep.subr.mxu0 0.0
        %895 = vmatpush1.msra.mxu0 %v848
        %896 = vmatprep.subr.mxu0 0.0
        %897 = vmatpush1.msra.mxu0 %v849
        %898 = vmatprep.subr.mxu0 0.0
        %899 = vmatpush1.msra.mxu0 %v850
        %900 = vmatprep.subr.mxu0 0.0
        %901 = vmatpush1.msra.mxu0 %v851
        %902 = vmatprep.subr.mxu0 0.0
        %903 = vmatpush1.msra.mxu0 %v852
        %904 = vmatprep.subr.mxu0 0.0
        %905 = vmatpush1.msra.mxu0 %v853
        %906 = vmatprep.subr.mxu0 0.0
        %907 = vmatpush1.msra.mxu0 %v854
        %908 = vmatprep.subr.mxu0 0.0
        %909 = vmatpush1.msra.mxu0 %v855
        %910 = vmatprep.subr.mxu0 0.0
        %911 = vmatpush1.msra.mxu0 %v856
        %912 = vmatprep.subr.mxu0 0.0
        %913 = vmatpush1.msra.mxu0 %v857
        %914 = vmatprep.subr.mxu0 0.0
        %915 = vmatpush1.msra.mxu0 %v858
        %916 = vmatprep.subr.mxu0 0.0
        %917 = vmatpush1.msra.mxu0 %v859
        %918 = vmatprep.subr.mxu0 0.0
        %919 = vmatpush1.msra.mxu0 %v860
        %920 = vmatprep.subr.mxu0 0.0
        %921 = vmatpush1.msra.mxu0 %v861
        %922 = vmatprep.subr.mxu0 0.0
        %923 = vmatpush1.msra.mxu0 %v862
        %924 = vmatprep.subr.mxu0 0.0
        %925 = vmatpush1.msra.mxu0 %v863
        %926 = vmatprep.subr.mxu0 0.0
        %927 = vmatpush1.msra.mxu0 %v864
        %928 = vmatprep.subr.mxu0 0.0
        %929 = vmatpush1.msra.mxu0 %v865
        %930 = vmatprep.subr.mxu0 0.0
        %931 = vmatpush1.msra.mxu0 %v866
        %932 = vmatprep.subr.mxu0 0.0
        %933 = vmatpush1.msra.mxu0 %v867
        %934 = vmatprep.subr.mxu0 0.0
        %935 = vmatpush1.msra.mxu0 %v868
        %936 = vmatprep.subr.mxu0 0.0
        %937 = vmatpush1.msra.mxu0 %v869
        %938 = vmatprep.mubr.f32.mxu0 %v835
        %939 = vmatmul.mubr.f32.gmra.mrb[0].mxu0 %v834
        %v940 = vpop.f32.mrb[0].mxu0
        %v941 = vadd.f32 %v873, %v940
        %v942 = vpop.f32.mrb[0].mxu0
        %943 = vmatprep.mubr.f32.mxu0 %v837
        %944 = vmatmul.mubr.f32.gmra.mrb[0].mxu0 %v836
        %v945 = vpop.f32.mrb[0].mxu0
        %v946 = vadd.f32 %v873, %v945
        %v947 = vpop.f32.mrb[0].mxu0
        %948 = vdwg.mxu0
        %v949 = vlaneseq
        %v950 = vshrl.u32 %v949, 7
        %v951 = vsub.s32 0, %v950
        %v952 = vrot.slane %v289, %v951
        %v953 = vmul.f32 %v952, %v941
        %v954 = vmul.f32 %v952, %v946
        %v955 = vadd.f32 %v554, %v953
        %v956 = vadd.f32 %v555, %v954
        %957 = vst.msk [vmem:[%s272] sm:$0xff] %vm734, %v955
        %958 = vst.msk [vmem:[%s272 + $0x8] sm:$0xff] %vm734, %v956
        %s959 = sand.u32 %s181, 1
        %s960 = scalar_lea.sflag [#allocation3], %s959
        %s961 = sand.u32 %s181, 1
        %s962 = smul.addr %s961, 16
        %s963 = scalar_lea.vmem [#allocation2], %s962
        // Predicated region
        $region49: #{tpu_custom_call.1} parent=47 // pred_check
          %p964 = pneg %p191
        $region50: #{tpu_custom_call.1} parent=47 // pred_check_branch
          %966 = sbr.rel (%p964) target = $region52
        $region51: #{tpu_custom_call.1} parent=47 // pred_region
          %s967 = smul.u32 2, %s21
          %s969 = ssub.s32 256, 256
          %970 = vsyncadd %s960, %s969
          %s971 = smul.addr %s967, 128
          %s972 = scalar_lea.hbm %s7, %s971
          %s973 = sshll.u32 %s963, 4
          %s974 = int_to_ptr.vmem [resolvable:$true] %s973
          %979 = dma.vmem_to_hbm [thread:$0]  %s974, 256, %s972, %s960, 128, 128, 8
        $region52: #{tpu_custom_call.1} parent=47 // pred_fallthru
          _
      $region48: #{tpu_custom_call.1} parent=5 // pred_fallthru
        _
      %p980 = scmp.le.s32.totalorder 2, %s16
      // Predicated region
      $region53: #{tpu_custom_call.1} parent=5 // pred_check
        %p981 = pneg %p980
      $region54: #{tpu_custom_call.1} parent=5 // pred_check_branch
        %983 = sbr.rel (%p981) target = $region56
      $region55: #{tpu_custom_call.1} parent=5 // pred_region
        %s984 = ssub.s32 %s16, 2
        // Predicated region
        $region57: #{tpu_custom_call.1} parent=55 // pred_check
          %p985 = pneg %p197
        $region58: #{tpu_custom_call.1} parent=55 // pred_check_branch
          %987 = sbr.rel (%p985) target = $region60
        $region59: #{tpu_custom_call.1} parent=55 // pred_region
          %s988 = sand.u32 %s182, 1
          %s989 = scalar_lea.sflag [#allocation3], %s988
          %s990 = sand.u32 %s182, 1
          %s991 = smul.addr %s990, 16
          %s992 = scalar_lea.vmem [#allocation2], %s991
          %993 = dma.done %s989, 256
        $region60: #{tpu_custom_call.1} parent=55 // pred_fallthru
          _
      $region56: #{tpu_custom_call.1} parent=5 // pred_fallthru
        _
    $region6: #{tpu_custom_call.1} parent=1 // loop_footer
      %s20 = sadd.s32 1, %s16
    $region7: #{tpu_custom_call.1} parent=1 // loop_footer_branch
      %15 = sbr.rel target = $region3
    $region8: #{tpu_custom_call.1} parent=1 // loop_exit
      _
    %994 = vsyncpa [#allocation3], 1
    %s995 = scalar_lea.sflag [#allocation3], 1
    %996 = vsyncpa %s995, 1

</llo_original>
